<compile_context>
chip_gen: v6e
topology: v6e:2x2x1
jax: 0.10.0
libtpu: 0.0.40
codegen_flags: <defaults>
</compile_context>

<pallas_src>
import jax
import jax.numpy as jnp
from jax.experimental import pallas as pl
from jax.experimental.pallas import tpu as pltpu

# ----------------------------- configuration -------------------------------
B        = 8                     # demo batch (small path)
N_LATENT = 16                    # flow latent dim
N_STATE  = 8                     # cell-state covariate dim
COND_DIM = N_LATENT + N_STATE    # 24 (perturbation-embed dim == N_LATENT)
HIDDEN   = 32                    # coupling-MLP hidden width
K_BLOCKS = 4                     # number of coupling blocks
HALF     = N_LATENT // 2         # 8
KH       = K_BLOCKS * HIDDEN     # 128

IN_ROWS   = N_LATENT + COND_DIM + N_STATE   # 48: [latent; condition; state] rows
CS_ROWS   = COND_DIM + N_STATE              # 32: cond+state rows (fused proj contraction)
R_B2      = 2 * KH                          # 256: start of b2 rows in bias_pack
BIAS_ROWS = 2 * KH + K_BLOCKS * N_LATENT    # 320

LANE           = 128
BATCH_TILE_MAX = 2048


# ------------------------------ Pallas kernel ------------------------------
def flow_trans_kernel(x_ref, wc_ref, w1p_ref, w2_ref, bias_ref, o_ref):
    """Feature-major (batch-on-lanes) encode + decode of the conditional flow.

    x_ref   : (48, TB)  f32  rows = [latent(16); condition(24); state(8)]
    wc_ref  : (256, 32) bf16 fused condition-projection weights (transposed)
    w1p_ref : (128, 8)  bf16 per-block W1_pass^T  (block k rows [k*32,(k+1)*32))
    w2_ref  : (64, 32)  bf16 per-block W2^T, s/t heads fused (block k rows [k*16,(k+1)*16))
    bias_ref: (320, 1)  f32  [b1(128); cn_base(128); b2(64)]
    o_ref   : (16, TB)  f32  z'  (lane-dense store)
    """
    f32, bf16 = jnp.float32, jnp.bfloat16

    # ---- fused, hoisted condition projections: ONE MXU dot per grid step ----
    #   proj[0:128]   = condition @ W1_cond           (original-condition path)
    #   proj[128:256] = state     @ W1_cond[:, 16:]   (new-condition state part)
    cond_state = x_ref[N_LATENT:IN_ROWS, :].astype(bf16)                  # (32, TB)
    proj = jnp.dot(wc_ref[...], cond_state, preferred_element_type=f32)   # (256, TB)
    b1      = bias_ref[0:KH, :]                                           # (128, 1)
    cn_base = bias_ref[KH:2 * KH, :]   # = b1 + cond_new @ W1_cond[:, :16] (precomputed)
    c_proj  = proj[0:KH, :] + b1                                          # (128, TB)
    cn_proj = proj[KH:2 * KH, :] + cn_base                                # (128, TB)

    def coupling(x_pass, x_chg, cond_proj, k, forward):
        # pre = W1_pass[k]^T @ x_pass + (cond @ W1_cond[k] + b1[k]) : (32, TB)
        w1p_k = w1p_ref[k * HIDDEN:(k + 1) * HIDDEN, :]                   # (32, 8) bf16
        pre = (jnp.dot(w1p_k, x_pass.astype(bf16), preferred_element_type=f32)
               + cond_proj[k * HIDDEN:(k + 1) * HIDDEN, :])
        hid = jnp.tanh(pre)                                               # (32, TB) f32
        # fused s/t head: W2[k]^T @ hid + b2[k]                     : (16, TB)
        w2_k = w2_ref[k * N_LATENT:(k + 1) * N_LATENT, :]                 # (16, 32) bf16
        b2_k = bias_ref[R_B2 + k * N_LATENT:R_B2 + (k + 1) * N_LATENT, :] # (16, 1)
        st = jnp.dot(w2_k, hid.astype(bf16), preferred_element_type=f32) + b2_k
        s = jnp.tanh(st[0:HALF, :])                                       # (8, TB)
        t = st[HALF:N_LATENT, :]                                          # (8, TB)
        if forward:
            return x_chg * jnp.exp(s) + t
        return (x_chg - t) * jnp.exp(-s)

    # halves stay separate across all blocks (no concats inside the loops)
    z1 = x_ref[0:HALF, :]
    z2 = x_ref[HALF:N_LATENT, :]

    # ---- flow forward with original condition (generate_v) ----
    for k in range(K_BLOCKS):
        if k % 2 == 0:
            z2 = coupling(z1, z2, c_proj, k, True)
        else:
            z1 = coupling(z2, z1, c_proj, k, True)

    # ---- flow reverse with new condition (generate_zprime) ----
    for k in reversed(range(K_BLOCKS)):
        if k % 2 == 0:
            z2 = coupling(z1, z2, cn_proj, k, False)
        else:
            z1 = coupling(z2, z1, cn_proj, k, False)

    # lane-dense, sublane-tile-aligned stores (no masked vst)
    o_ref[0:HALF, :] = z1
    o_ref[HALF:N_LATENT, :] = z2


# --------------------------- parameter packing -----------------------------
def pack_params(params):
    """Transpose / split / fuse the flow weights ONCE (bf16 weights, f32 biases)."""
    f32, bf16 = jnp.float32, jnp.bfloat16
    w1, b1, w2, b2 = params["w1"], params["b1"], params["w2"], params["b2"]

    # W1_pass^T, block-major on rows: (K*HIDDEN, HALF) = (128, 8)
    w1p_t = jnp.concatenate([w1[k, :HALF, :].T for k in range(K_BLOCKS)],
                            axis=0).astype(bf16)

    # W1_cond^T, block-major on rows: (K*HIDDEN, COND_DIM) = (128, 24), f32
    w1c_t = jnp.concatenate([w1[k, HALF:, :].T for k in range(K_BLOCKS)], axis=0)

    # fused condition-projection weight (256, 32):
    #   rows [0:128)  : original condition -> cols [0:24) = W1_cond^T, cols [24:32) = 0
    #   rows [128:256): new condition      -> cols [0:24) = 0, cols [24:32) = W1_cond^T[:, 16:]
    top = jnp.concatenate([w1c_t, jnp.zeros((KH, N_STATE), f32)], axis=1)
    bot = jnp.concatenate([jnp.zeros((KH, COND_DIM), f32), w1c_t[:, N_LATENT:]], axis=1)
    w_cond_full = jnp.concatenate([top, bot], axis=0).astype(bf16)        # (256, 32)

    # W2^T with the s/t heads fused, block-major on rows: (K*16, 32) = (64, 32)
    w2_t = jnp.concatenate([w2[k].T for k in range(K_BLOCKS)], axis=0).astype(bf16)

    # f32 biases (kept out of the bf16 weight buffers):
    #   rows [0:128)   b1
    #   rows [128:256) cn_base = cond_new @ W1_cond[:, :16] + b1   (batch-constant)
    #   rows [256:320) b2 (s rows then t rows, per block)
    b1_col = b1.reshape(KH, 1).astype(f32)
    cn_col = params["condition_new"].reshape(N_LATENT, 1)
    cn_base = jnp.dot(w1c_t[:, :N_LATENT].astype(bf16), cn_col.astype(bf16),
                      preferred_element_type=f32) + b1_col                # (128, 1)
    b2_col = b2.reshape(K_BLOCKS * N_LATENT, 1).astype(f32)
    bias_pack = jnp.concatenate([b1_col, cn_base, b2_col], axis=0)        # (320, 1)

    return w_cond_full, w1p_t, w2_t, bias_pack


# ------------------------------ JAX wrapper --------------------------------
def _round_up(x, m):
    return ((x + m - 1) // m) * m


def scvi_state_optim_trans_forward(latent_start, condition, state, params):
    """Mirrors SCVI_State_OptimTrans.forward(latent_start, condition, state)."""
    latent_start = jnp.asarray(latent_start, jnp.float32)
    condition    = jnp.asarray(condition, jnp.float32)
    state        = jnp.asarray(state, jnp.float32)
    w_cond_full, w1p_t, w2_t, bias_pack = pack_params(params)

    b_in = latent_start.shape[0]

    # one consolidated feature-major input slab: (48, B), batch on lanes
    x_t = jnp.concatenate([latent_start, condition, state], axis=1).T     # (48, B)

    # batch tile: lane-dense (multiple of 128), large enough to amortize the
    # ~0.35us/step grid overhead, but >=2 grid steps when the batch allows so
    # v7x's two TensorCores both get work under dimension_semantics=("parallel",).
    b_lane = _round_up(b_in, LANE)
    tb = min(BATCH_TILE_MAX, b_lane)
    if b_lane >= 2 * LANE:
        tb = min(tb, _round_up(-(-b_lane // 2), LANE))
    b_pad = _round_up(b_lane, tb)
    if b_pad != b_in:
        x_t = jnp.pad(x_t, ((0, 0), (0, b_pad - b_in)))   # zero-padded cols stay finite

    out_t = pl.pallas_call(
        flow_trans_kernel,
        out_shape=jax.ShapeDtypeStruct((N_LATENT, b_pad), jnp.float32),
        grid=(b_pad // tb,),
        in_specs=[
            pl.BlockSpec((IN_ROWS, tb), lambda i: (0, i)),
            # constant-index weight blocks: the Pallas pipeline skips the copy
            # when the block index does not change, so these are DMA'd once.
            pl.BlockSpec((2 * KH, CS_ROWS), lambda i: (0, 0)),
            pl.BlockSpec((K_BLOCKS * HIDDEN, HALF), lambda i: (0, 0)),
            pl.BlockSpec((K_BLOCKS * N_LATENT, HIDDEN), lambda i: (0, 0)),
            pl.BlockSpec((BIAS_ROWS, 1), lambda i: (0, 0)),
        ],
        out_specs=pl.BlockSpec((N_LATENT, tb), lambda i: (0, i)),
        compiler_params=pltpu.CompilerParams(
            dimension_semantics=("parallel",),
            vmem_limit_bytes=32 * 1024 * 1024),
    )(x_t, w_cond_full, w1p_t, w2_t, bias_pack)

    return out_t[:, :b_in].T


# --------------------------- pure-JAX reference ----------------------------
# Original concat-based, batch-major formulation of the same flow. It mirrors
# the kernel's mixed precision (bf16 MXU inputs, f32 accumulation/elementwise)
# so the check verifies the algebraic/layout refactoring, not bf16 rounding.
def _reference(latent_start, condition, state, params):
    f32, bf16 = jnp.float32, jnp.bfloat16
    cond_new_part = jnp.tile(params["condition_new"], (latent_start.shape[0], 1))
    cn = jnp.concatenate([cond_new_part, state], axis=1)
    c  = condition
    z  = latent_start.astype(f32)

    def coupling(x_pass, x_chg, cond, k, forward):
        h   = jnp.concatenate([x_pass, cond], axis=1)
        hid = jnp.tanh(jnp.dot(h.astype(bf16), params["w1"][k].astype(bf16),
                               preferred_element_type=f32) + params["b1"][k])
        st  = jnp.dot(hid.astype(bf16), params["w2"][k].astype(bf16),
                      preferred_element_type=f32) + params["b2"][k]
        s, t = jnp.tanh(st[:, :HALF]), st[:, HALF:]
        return x_chg * jnp.exp(s) + t if forward else (x_chg - t) * jnp.exp(-s)

    for k in range(K_BLOCKS):
        z1, z2 = z[:, :HALF], z[:, HALF:]
        if k % 2 == 0:
            z2 = coupling(z1, z2, c, k, True)
        else:
            z1 = coupling(z2, z1, c, k, True)
        z = jnp.concatenate([z1, z2], axis=1)
    for k in reversed(range(K_BLOCKS)):
        z1, z2 = z[:, :HALF], z[:, HALF:]
        if k % 2 == 0:
            z2 = coupling(z1, z2, cn, k, False)
        else:
            z1 = coupling(z2, z1, cn, k, False)
        z = jnp.concatenate([z1, z2], axis=1)
    return z


# ------------------------- deterministic parameters ------------------------
def make_params(key):
    ks = jax.random.split(key, 5)
    scale = 0.1
    return {
        # nn.Parameter sampled from Normal(0, 1) with shape (1, n_latent)
        "condition_new": jax.random.normal(ks[0], (1, N_LATENT), jnp.float32),
        # synthetic flow weights: K coupling blocks, shared s/t MLP per block
        "w1": scale * jax.random.normal(ks[1], (K_BLOCKS, HALF + COND_DIM, HIDDEN),
                                        jnp.float32),
        "b1": scale * jax.random.normal(ks[2], (K_BLOCKS, 1, HIDDEN), jnp.float32),
        "w2": scale * jax.random.normal(ks[3], (K_BLOCKS, HIDDEN, N_LATENT),
                                        jnp.float32),
        "b2": scale * jax.random.normal(ks[4], (K_BLOCKS, 1, N_LATENT), jnp.float32),
    }


# ---------------------------------- main -----------------------------------
if __name__ == "__main__":
    key = jax.random.PRNGKey(0)
    kp, kl, kc, ks, kl2, kc2, ks2 = jax.random.split(key, 7)
    params = make_params(kp)

    # ---- small batch (grid of one 128-wide tile) ----
    latent_start = jax.random.normal(kl, (B, N_LATENT), jnp.float32)
    condition    = jax.random.normal(kc, (B, COND_DIM), jnp.float32)
    state        = jax.random.normal(ks, (B, N_STATE), jnp.float32)

    out = scvi_state_optim_trans_forward(latent_start, condition, state, params)
    out = jax.block_until_ready(out)
    ref = _reference(latent_start, condition, state, params)
    assert out.shape == (B, N_LATENT)
    assert jnp.allclose(out, ref, atol=2e-2, rtol=2e-2), \
        "kernel vs reference mismatch (small batch)"

    # ---- larger batch: 2 grid steps of 256 (both v7x TensorCores get work) ----
    BL = 512
    latent2 = jax.random.normal(kl2, (BL, N_LATENT), jnp.float32)
    cond2   = jax.random.normal(kc2, (BL, COND_DIM), jnp.float32)
    state2  = jax.random.normal(ks2, (BL, N_STATE), jnp.float32)

    out2 = scvi_state_optim_trans_forward(latent2, cond2, state2, params)
    out2 = jax.block_until_ready(out2)
    ref2 = _reference(latent2, cond2, state2, params)
    assert out2.shape == (BL, N_LATENT)
    assert jnp.allclose(out2, ref2, atol=2e-2, rtol=2e-2), \
        "kernel vs reference mismatch (large batch)"

    # TODO(synk): the real `model.flow` (perturbnet cINN checkpoint) is external;
    # a deterministic synthetic conditional coupling flow stands in for it here.
    print("KERNEL_OK")
</pallas_src>

<mosaic_0001>
module attributes {stable_mosaic.version = 11 : i64} {
  func.func @flow_trans_kernel(%arg0: i32, %arg1: memref<48x128xf32, #tpu.memory_space<vmem>>, %arg2: memref<256x32xbf16, #tpu.memory_space<vmem>>, %arg3: memref<128x8xbf16, #tpu.memory_space<vmem>>, %arg4: memref<64x32xbf16, #tpu.memory_space<vmem>>, %arg5: memref<320x1xf32, #tpu.memory_space<vmem>>, %arg6: memref<16x128xf32, #tpu.memory_space<vmem>>) attributes {dimension_semantics = [#tpu.dimension_semantics<parallel>], iteration_bounds = array<i64: 1>, scalar_prefetch = 0 : i64, scratch_operands = 0 : i64, tpu.core_type = #tpu.core_type<tc>, window_params = [{transform_indices = @transform_0, window_bounds = array<i64: 48, 128>}, {pipeline_mode = #tpu.pipeline_mode<synchronous>, transform_indices = @transform_1, window_bounds = array<i64: 256, 32>}, {pipeline_mode = #tpu.pipeline_mode<synchronous>, transform_indices = @transform_2, window_bounds = array<i64: 128, 8>}, {pipeline_mode = #tpu.pipeline_mode<synchronous>, transform_indices = @transform_3, window_bounds = array<i64: 64, 32>}, {pipeline_mode = #tpu.pipeline_mode<synchronous>, transform_indices = @transform_4, window_bounds = array<i64: 320, 1>}, {transform_indices = @transform_5, window_bounds = array<i64: 16, 128>}]} {
    %c16 = arith.constant 16 : index
    %c0 = arith.constant 0 : index
    %0 = vector.load %arg1[%c16, %c0] : memref<48x128xf32, #tpu.memory_space<vmem>>, vector<32x128xf32>
    %1 = arith.truncf %0 : vector<32x128xf32> to vector<32x128xbf16>
    %c0_0 = arith.constant 0 : index
    %c0_1 = arith.constant 0 : index
    %2 = vector.load %arg2[%c0_0, %c0_1] : memref<256x32xbf16, #tpu.memory_space<vmem>>, vector<256x32xbf16>
    %cst = arith.constant dense<0.000000e+00> : vector<256x128xf32>
    %3 = tpu.matmul %2, %1, %cst {dimension_numbers = #tpu.dot_dimension_numbers<[1], [0], [0], [1], [0, 0, 1, 1], [], []>} : vector<256x32xbf16>, vector<32x128xbf16>, vector<256x128xf32> -> vector<256x128xf32>
    %c0_2 = arith.constant 0 : index
    %c0_3 = arith.constant 0 : index
    %4 = vector.load %arg5[%c0_2, %c0_3] : memref<320x1xf32, #tpu.memory_space<vmem>>, vector<128x1xf32>
    %c128 = arith.constant 128 : index
    %c0_4 = arith.constant 0 : index
    %5 = vector.load %arg5[%c128, %c0_4] : memref<320x1xf32, #tpu.memory_space<vmem>>, vector<128x1xf32>
    %6 = vector.extract_strided_slice %3 {offsets = [0, 0], sizes = [128, 128], strides = [1, 1]} : vector<256x128xf32> to vector<128x128xf32>
    %7 = vector.broadcast %4 : vector<128x1xf32> to vector<128x128xf32>
    %8 = arith.addf %6, %7 : vector<128x128xf32>
    %9 = vector.extract_strided_slice %3 {offsets = [128, 0], sizes = [128, 128], strides = [1, 1]} : vector<256x128xf32> to vector<128x128xf32>
    %10 = vector.broadcast %5 : vector<128x1xf32> to vector<128x128xf32>
    %11 = arith.addf %9, %10 : vector<128x128xf32>
    %c0_5 = arith.constant 0 : index
    %c0_6 = arith.constant 0 : index
    %12 = vector.load %arg1[%c0_5, %c0_6] : memref<48x128xf32, #tpu.memory_space<vmem>>, vector<8x128xf32>
    %c8 = arith.constant 8 : index
    %c0_7 = arith.constant 0 : index
    %13 = vector.load %arg1[%c8, %c0_7] : memref<48x128xf32, #tpu.memory_space<vmem>>, vector<8x128xf32>
    %c0_8 = arith.constant 0 : index
    %c0_9 = arith.constant 0 : index
    %14 = vector.load %arg3[%c0_8, %c0_9] : memref<128x8xbf16, #tpu.memory_space<vmem>>, vector<32x8xbf16>
    %15 = arith.truncf %12 : vector<8x128xf32> to vector<8x128xbf16>
    %cst_10 = arith.constant dense<0.000000e+00> : vector<32x128xf32>
    %16 = tpu.matmul %14, %15, %cst_10 {dimension_numbers = #tpu.dot_dimension_numbers<[1], [0], [0], [1], [0, 0, 1, 1], [], []>} : vector<32x8xbf16>, vector<8x128xbf16>, vector<32x128xf32> -> vector<32x128xf32>
    %17 = vector.extract_strided_slice %8 {offsets = [0, 0], sizes = [32, 128], strides = [1, 1]} : vector<128x128xf32> to vector<32x128xf32>
    %18 = arith.addf %16, %17 : vector<32x128xf32>
    %19 = math.tanh %18 : vector<32x128xf32>
    %c0_11 = arith.constant 0 : index
    %c0_12 = arith.constant 0 : index
    %20 = vector.load %arg4[%c0_11, %c0_12] : memref<64x32xbf16, #tpu.memory_space<vmem>>, vector<16x32xbf16>
    %c256 = arith.constant 256 : index
    %c0_13 = arith.constant 0 : index
    %21 = vector.load %arg5[%c256, %c0_13] : memref<320x1xf32, #tpu.memory_space<vmem>>, vector<16x1xf32>
    %22 = arith.truncf %19 : vector<32x128xf32> to vector<32x128xbf16>
    %cst_14 = arith.constant dense<0.000000e+00> : vector<16x128xf32>
    %23 = tpu.matmul %20, %22, %cst_14 {dimension_numbers = #tpu.dot_dimension_numbers<[1], [0], [0], [1], [0, 0, 1, 1], [], []>} : vector<16x32xbf16>, vector<32x128xbf16>, vector<16x128xf32> -> vector<16x128xf32>
    %24 = vector.broadcast %21 : vector<16x1xf32> to vector<16x128xf32>
    %25 = arith.addf %23, %24 : vector<16x128xf32>
    %26 = vector.extract_strided_slice %25 {offsets = [0, 0], sizes = [8, 128], strides = [1, 1]} : vector<16x128xf32> to vector<8x128xf32>
    %27 = math.tanh %26 : vector<8x128xf32>
    %28 = vector.extract_strided_slice %25 {offsets = [8, 0], sizes = [8, 128], strides = [1, 1]} : vector<16x128xf32> to vector<8x128xf32>
    %29 = math.exp %27 : vector<8x128xf32>
    %30 = arith.mulf %13, %29 : vector<8x128xf32>
    %31 = arith.addf %30, %28 : vector<8x128xf32>
    %c32 = arith.constant 32 : index
    %c0_15 = arith.constant 0 : index
    %32 = vector.load %arg3[%c32, %c0_15] : memref<128x8xbf16, #tpu.memory_space<vmem>>, vector<32x8xbf16>
    %33 = arith.truncf %31 : vector<8x128xf32> to vector<8x128xbf16>
    %cst_16 = arith.constant dense<0.000000e+00> : vector<32x128xf32>
    %34 = tpu.matmul %32, %33, %cst_16 {dimension_numbers = #tpu.dot_dimension_numbers<[1], [0], [0], [1], [0, 0, 1, 1], [], []>} : vector<32x8xbf16>, vector<8x128xbf16>, vector<32x128xf32> -> vector<32x128xf32>
    %35 = vector.extract_strided_slice %8 {offsets = [32, 0], sizes = [32, 128], strides = [1, 1]} : vector<128x128xf32> to vector<32x128xf32>
    %36 = arith.addf %34, %35 : vector<32x128xf32>
    %37 = math.tanh %36 : vector<32x128xf32>
    %c16_17 = arith.constant 16 : index
    %c0_18 = arith.constant 0 : index
    %38 = vector.load %arg4[%c16_17, %c0_18] : memref<64x32xbf16, #tpu.memory_space<vmem>>, vector<16x32xbf16>
    %c272 = arith.constant 272 : index
    %c0_19 = arith.constant 0 : index
    %39 = vector.load %arg5[%c272, %c0_19] : memref<320x1xf32, #tpu.memory_space<vmem>>, vector<16x1xf32>
    %40 = arith.truncf %37 : vector<32x128xf32> to vector<32x128xbf16>
    %cst_20 = arith.constant dense<0.000000e+00> : vector<16x128xf32>
    %41 = tpu.matmul %38, %40, %cst_20 {dimension_numbers = #tpu.dot_dimension_numbers<[1], [0], [0], [1], [0, 0, 1, 1], [], []>} : vector<16x32xbf16>, vector<32x128xbf16>, vector<16x128xf32> -> vector<16x128xf32>
    %42 = vector.broadcast %39 : vector<16x1xf32> to vector<16x128xf32>
    %43 = arith.addf %41, %42 : vector<16x128xf32>
    %44 = vector.extract_strided_slice %43 {offsets = [0, 0], sizes = [8, 128], strides = [1, 1]} : vector<16x128xf32> to vector<8x128xf32>
    %45 = math.tanh %44 : vector<8x128xf32>
    %46 = vector.extract_strided_slice %43 {offsets = [8, 0], sizes = [8, 128], strides = [1, 1]} : vector<16x128xf32> to vector<8x128xf32>
    %47 = math.exp %45 : vector<8x128xf32>
    %48 = arith.mulf %12, %47 : vector<8x128xf32>
    %49 = arith.addf %48, %46 : vector<8x128xf32>
    %c64 = arith.constant 64 : index
    %c0_21 = arith.constant 0 : index
    %50 = vector.load %arg3[%c64, %c0_21] : memref<128x8xbf16, #tpu.memory_space<vmem>>, vector<32x8xbf16>
    %51 = arith.truncf %49 : vector<8x128xf32> to vector<8x128xbf16>
    %cst_22 = arith.constant dense<0.000000e+00> : vector<32x128xf32>
    %52 = tpu.matmul %50, %51, %cst_22 {dimension_numbers = #tpu.dot_dimension_numbers<[1], [0], [0], [1], [0, 0, 1, 1], [], []>} : vector<32x8xbf16>, vector<8x128xbf16>, vector<32x128xf32> -> vector<32x128xf32>
    %53 = vector.extract_strided_slice %8 {offsets = [64, 0], sizes = [32, 128], strides = [1, 1]} : vector<128x128xf32> to vector<32x128xf32>
    %54 = arith.addf %52, %53 : vector<32x128xf32>
    %55 = math.tanh %54 : vector<32x128xf32>
    %c32_23 = arith.constant 32 : index
    %c0_24 = arith.constant 0 : index
    %56 = vector.load %arg4[%c32_23, %c0_24] : memref<64x32xbf16, #tpu.memory_space<vmem>>, vector<16x32xbf16>
    %c288 = arith.constant 288 : index
    %c0_25 = arith.constant 0 : index
    %57 = vector.load %arg5[%c288, %c0_25] : memref<320x1xf32, #tpu.memory_space<vmem>>, vector<16x1xf32>
    %58 = arith.truncf %55 : vector<32x128xf32> to vector<32x128xbf16>
    %cst_26 = arith.constant dense<0.000000e+00> : vector<16x128xf32>
    %59 = tpu.matmul %56, %58, %cst_26 {dimension_numbers = #tpu.dot_dimension_numbers<[1], [0], [0], [1], [0, 0, 1, 1], [], []>} : vector<16x32xbf16>, vector<32x128xbf16>, vector<16x128xf32> -> vector<16x128xf32>
    %60 = vector.broadcast %57 : vector<16x1xf32> to vector<16x128xf32>
    %61 = arith.addf %59, %60 : vector<16x128xf32>
    %62 = vector.extract_strided_slice %61 {offsets = [0, 0], sizes = [8, 128], strides = [1, 1]} : vector<16x128xf32> to vector<8x128xf32>
    %63 = math.tanh %62 : vector<8x128xf32>
    %64 = vector.extract_strided_slice %61 {offsets = [8, 0], sizes = [8, 128], strides = [1, 1]} : vector<16x128xf32> to vector<8x128xf32>
    %65 = math.exp %63 : vector<8x128xf32>
    %66 = arith.mulf %31, %65 : vector<8x128xf32>
    %67 = arith.addf %66, %64 : vector<8x128xf32>
    %c96 = arith.constant 96 : index
    %c0_27 = arith.constant 0 : index
    %68 = vector.load %arg3[%c96, %c0_27] : memref<128x8xbf16, #tpu.memory_space<vmem>>, vector<32x8xbf16>
    %69 = arith.truncf %67 : vector<8x128xf32> to vector<8x128xbf16>
    %cst_28 = arith.constant dense<0.000000e+00> : vector<32x128xf32>
    %70 = tpu.matmul %68, %69, %cst_28 {dimension_numbers = #tpu.dot_dimension_numbers<[1], [0], [0], [1], [0, 0, 1, 1], [], []>} : vector<32x8xbf16>, vector<8x128xbf16>, vector<32x128xf32> -> vector<32x128xf32>
    %71 = vector.extract_strided_slice %8 {offsets = [96, 0], sizes = [32, 128], strides = [1, 1]} : vector<128x128xf32> to vector<32x128xf32>
    %72 = arith.addf %70, %71 : vector<32x128xf32>
    %73 = math.tanh %72 : vector<32x128xf32>
    %c48 = arith.constant 48 : index
    %c0_29 = arith.constant 0 : index
    %74 = vector.load %arg4[%c48, %c0_29] : memref<64x32xbf16, #tpu.memory_space<vmem>>, vector<16x32xbf16>
    %c304 = arith.constant 304 : index
    %c0_30 = arith.constant 0 : index
    %75 = vector.load %arg5[%c304, %c0_30] : memref<320x1xf32, #tpu.memory_space<vmem>>, vector<16x1xf32>
    %76 = arith.truncf %73 : vector<32x128xf32> to vector<32x128xbf16>
    %cst_31 = arith.constant dense<0.000000e+00> : vector<16x128xf32>
    %77 = tpu.matmul %74, %76, %cst_31 {dimension_numbers = #tpu.dot_dimension_numbers<[1], [0], [0], [1], [0, 0, 1, 1], [], []>} : vector<16x32xbf16>, vector<32x128xbf16>, vector<16x128xf32> -> vector<16x128xf32>
    %78 = vector.broadcast %75 : vector<16x1xf32> to vector<16x128xf32>
    %79 = arith.addf %77, %78 : vector<16x128xf32>
    %80 = vector.extract_strided_slice %79 {offsets = [0, 0], sizes = [8, 128], strides = [1, 1]} : vector<16x128xf32> to vector<8x128xf32>
    %81 = math.tanh %80 : vector<8x128xf32>
    %82 = vector.extract_strided_slice %79 {offsets = [8, 0], sizes = [8, 128], strides = [1, 1]} : vector<16x128xf32> to vector<8x128xf32>
    %83 = math.exp %81 : vector<8x128xf32>
    %84 = arith.mulf %49, %83 : vector<8x128xf32>
    %85 = arith.addf %84, %82 : vector<8x128xf32>
    %c96_32 = arith.constant 96 : index
    %c0_33 = arith.constant 0 : index
    %86 = vector.load %arg3[%c96_32, %c0_33] : memref<128x8xbf16, #tpu.memory_space<vmem>>, vector<32x8xbf16>
    %87 = arith.truncf %67 : vector<8x128xf32> to vector<8x128xbf16>
    %cst_34 = arith.constant dense<0.000000e+00> : vector<32x128xf32>
    %88 = tpu.matmul %86, %87, %cst_34 {dimension_numbers = #tpu.dot_dimension_numbers<[1], [0], [0], [1], [0, 0, 1, 1], [], []>} : vector<32x8xbf16>, vector<8x128xbf16>, vector<32x128xf32> -> vector<32x128xf32>
    %89 = vector.extract_strided_slice %11 {offsets = [96, 0], sizes = [32, 128], strides = [1, 1]} : vector<128x128xf32> to vector<32x128xf32>
    %90 = arith.addf %88, %89 : vector<32x128xf32>
    %91 = math.tanh %90 : vector<32x128xf32>
    %c48_35 = arith.constant 48 : index
    %c0_36 = arith.constant 0 : index
    %92 = vector.load %arg4[%c48_35, %c0_36] : memref<64x32xbf16, #tpu.memory_space<vmem>>, vector<16x32xbf16>
    %c304_37 = arith.constant 304 : index
    %c0_38 = arith.constant 0 : index
    %93 = vector.load %arg5[%c304_37, %c0_38] : memref<320x1xf32, #tpu.memory_space<vmem>>, vector<16x1xf32>
    %94 = arith.truncf %91 : vector<32x128xf32> to vector<32x128xbf16>
    %cst_39 = arith.constant dense<0.000000e+00> : vector<16x128xf32>
    %95 = tpu.matmul %92, %94, %cst_39 {dimension_numbers = #tpu.dot_dimension_numbers<[1], [0], [0], [1], [0, 0, 1, 1], [], []>} : vector<16x32xbf16>, vector<32x128xbf16>, vector<16x128xf32> -> vector<16x128xf32>
    %96 = vector.broadcast %93 : vector<16x1xf32> to vector<16x128xf32>
    %97 = arith.addf %95, %96 : vector<16x128xf32>
    %98 = vector.extract_strided_slice %97 {offsets = [0, 0], sizes = [8, 128], strides = [1, 1]} : vector<16x128xf32> to vector<8x128xf32>
    %99 = math.tanh %98 : vector<8x128xf32>
    %100 = vector.extract_strided_slice %97 {offsets = [8, 0], sizes = [8, 128], strides = [1, 1]} : vector<16x128xf32> to vector<8x128xf32>
    %101 = arith.subf %85, %100 : vector<8x128xf32>
    %cst_40 = arith.constant 0.000000e+00 : f32
    %102 = vector.broadcast %cst_40 : f32 to vector<8x128xf32>
    %103 = arith.subf %102, %99 : vector<8x128xf32>
    %104 = math.exp %103 : vector<8x128xf32>
    %105 = arith.mulf %101, %104 : vector<8x128xf32>
    %c64_41 = arith.constant 64 : index
    %c0_42 = arith.constant 0 : index
    %106 = vector.load %arg3[%c64_41, %c0_42] : memref<128x8xbf16, #tpu.memory_space<vmem>>, vector<32x8xbf16>
    %107 = arith.truncf %105 : vector<8x128xf32> to vector<8x128xbf16>
    %cst_43 = arith.constant dense<0.000000e+00> : vector<32x128xf32>
    %108 = tpu.matmul %106, %107, %cst_43 {dimension_numbers = #tpu.dot_dimension_numbers<[1], [0], [0], [1], [0, 0, 1, 1], [], []>} : vector<32x8xbf16>, vector<8x128xbf16>, vector<32x128xf32> -> vector<32x128xf32>
    %109 = vector.extract_strided_slice %11 {offsets = [64, 0], sizes = [32, 128], strides = [1, 1]} : vector<128x128xf32> to vector<32x128xf32>
    %110 = arith.addf %108, %109 : vector<32x128xf32>
    %111 = math.tanh %110 : vector<32x128xf32>
    %c32_44 = arith.constant 32 : index
    %c0_45 = arith.constant 0 : index
    %112 = vector.load %arg4[%c32_44, %c0_45] : memref<64x32xbf16, #tpu.memory_space<vmem>>, vector<16x32xbf16>
    %c288_46 = arith.constant 288 : index
    %c0_47 = arith.constant 0 : index
    %113 = vector.load %arg5[%c288_46, %c0_47] : memref<320x1xf32, #tpu.memory_space<vmem>>, vector<16x1xf32>
    %114 = arith.truncf %111 : vector<32x128xf32> to vector<32x128xbf16>
    %cst_48 = arith.constant dense<0.000000e+00> : vector<16x128xf32>
    %115 = tpu.matmul %112, %114, %cst_48 {dimension_numbers = #tpu.dot_dimension_numbers<[1], [0], [0], [1], [0, 0, 1, 1], [], []>} : vector<16x32xbf16>, vector<32x128xbf16>, vector<16x128xf32> -> vector<16x128xf32>
    %116 = vector.broadcast %113 : vector<16x1xf32> to vector<16x128xf32>
    %117 = arith.addf %115, %116 : vector<16x128xf32>
    %118 = vector.extract_strided_slice %117 {offsets = [0, 0], sizes = [8, 128], strides = [1, 1]} : vector<16x128xf32> to vector<8x128xf32>
    %119 = math.tanh %118 : vector<8x128xf32>
    %120 = vector.extract_strided_slice %117 {offsets = [8, 0], sizes = [8, 128], strides = [1, 1]} : vector<16x128xf32> to vector<8x128xf32>
    %121 = arith.subf %67, %120 : vector<8x128xf32>
    %cst_49 = arith.constant 0.000000e+00 : f32
    %122 = vector.broadcast %cst_49 : f32 to vector<8x128xf32>
    %123 = arith.subf %122, %119 : vector<8x128xf32>
    %124 = math.exp %123 : vector<8x128xf32>
    %125 = arith.mulf %121, %124 : vector<8x128xf32>
    %c32_50 = arith.constant 32 : index
    %c0_51 = arith.constant 0 : index
    %126 = vector.load %arg3[%c32_50, %c0_51] : memref<128x8xbf16, #tpu.memory_space<vmem>>, vector<32x8xbf16>
    %127 = arith.truncf %125 : vector<8x128xf32> to vector<8x128xbf16>
    %cst_52 = arith.constant dense<0.000000e+00> : vector<32x128xf32>
    %128 = tpu.matmul %126, %127, %cst_52 {dimension_numbers = #tpu.dot_dimension_numbers<[1], [0], [0], [1], [0, 0, 1, 1], [], []>} : vector<32x8xbf16>, vector<8x128xbf16>, vector<32x128xf32> -> vector<32x128xf32>
    %129 = vector.extract_strided_slice %11 {offsets = [32, 0], sizes = [32, 128], strides = [1, 1]} : vector<128x128xf32> to vector<32x128xf32>
    %130 = arith.addf %128, %129 : vector<32x128xf32>
    %131 = math.tanh %130 : vector<32x128xf32>
    %c16_53 = arith.constant 16 : index
    %c0_54 = arith.constant 0 : index
    %132 = vector.load %arg4[%c16_53, %c0_54] : memref<64x32xbf16, #tpu.memory_space<vmem>>, vector<16x32xbf16>
    %c272_55 = arith.constant 272 : index
    %c0_56 = arith.constant 0 : index
    %133 = vector.load %arg5[%c272_55, %c0_56] : memref<320x1xf32, #tpu.memory_space<vmem>>, vector<16x1xf32>
    %134 = arith.truncf %131 : vector<32x128xf32> to vector<32x128xbf16>
    %cst_57 = arith.constant dense<0.000000e+00> : vector<16x128xf32>
    %135 = tpu.matmul %132, %134, %cst_57 {dimension_numbers = #tpu.dot_dimension_numbers<[1], [0], [0], [1], [0, 0, 1, 1], [], []>} : vector<16x32xbf16>, vector<32x128xbf16>, vector<16x128xf32> -> vector<16x128xf32>
    %136 = vector.broadcast %133 : vector<16x1xf32> to vector<16x128xf32>
    %137 = arith.addf %135, %136 : vector<16x128xf32>
    %138 = vector.extract_strided_slice %137 {offsets = [0, 0], sizes = [8, 128], strides = [1, 1]} : vector<16x128xf32> to vector<8x128xf32>
    %139 = math.tanh %138 : vector<8x128xf32>
    %140 = vector.extract_strided_slice %137 {offsets = [8, 0], sizes = [8, 128], strides = [1, 1]} : vector<16x128xf32> to vector<8x128xf32>
    %141 = arith.subf %105, %140 : vector<8x128xf32>
    %cst_58 = arith.constant 0.000000e+00 : f32
    %142 = vector.broadcast %cst_58 : f32 to vector<8x128xf32>
    %143 = arith.subf %142, %139 : vector<8x128xf32>
    %144 = math.exp %143 : vector<8x128xf32>
    %145 = arith.mulf %141, %144 : vector<8x128xf32>
    %c0_59 = arith.constant 0 : index
    %c0_60 = arith.constant 0 : index
    %146 = vector.load %arg3[%c0_59, %c0_60] : memref<128x8xbf16, #tpu.memory_space<vmem>>, vector<32x8xbf16>
    %147 = arith.truncf %145 : vector<8x128xf32> to vector<8x128xbf16>
    %cst_61 = arith.constant dense<0.000000e+00> : vector<32x128xf32>
    %148 = tpu.matmul %146, %147, %cst_61 {dimension_numbers = #tpu.dot_dimension_numbers<[1], [0], [0], [1], [0, 0, 1, 1], [], []>} : vector<32x8xbf16>, vector<8x128xbf16>, vector<32x128xf32> -> vector<32x128xf32>
    %149 = vector.extract_strided_slice %11 {offsets = [0, 0], sizes = [32, 128], strides = [1, 1]} : vector<128x128xf32> to vector<32x128xf32>
    %150 = arith.addf %148, %149 : vector<32x128xf32>
    %151 = math.tanh %150 : vector<32x128xf32>
    %c0_62 = arith.constant 0 : index
    %c0_63 = arith.constant 0 : index
    %152 = vector.load %arg4[%c0_62, %c0_63] : memref<64x32xbf16, #tpu.memory_space<vmem>>, vector<16x32xbf16>
    %c256_64 = arith.constant 256 : index
    %c0_65 = arith.constant 0 : index
    %153 = vector.load %arg5[%c256_64, %c0_65] : memref<320x1xf32, #tpu.memory_space<vmem>>, vector<16x1xf32>
    %154 = arith.truncf %151 : vector<32x128xf32> to vector<32x128xbf16>
    %cst_66 = arith.constant dense<0.000000e+00> : vector<16x128xf32>
    %155 = tpu.matmul %152, %154, %cst_66 {dimension_numbers = #tpu.dot_dimension_numbers<[1], [0], [0], [1], [0, 0, 1, 1], [], []>} : vector<16x32xbf16>, vector<32x128xbf16>, vector<16x128xf32> -> vector<16x128xf32>
    %156 = vector.broadcast %153 : vector<16x1xf32> to vector<16x128xf32>
    %157 = arith.addf %155, %156 : vector<16x128xf32>
    %158 = vector.extract_strided_slice %157 {offsets = [0, 0], sizes = [8, 128], strides = [1, 1]} : vector<16x128xf32> to vector<8x128xf32>
    %159 = math.tanh %158 : vector<8x128xf32>
    %160 = vector.extract_strided_slice %157 {offsets = [8, 0], sizes = [8, 128], strides = [1, 1]} : vector<16x128xf32> to vector<8x128xf32>
    %161 = arith.subf %125, %160 : vector<8x128xf32>
    %cst_67 = arith.constant 0.000000e+00 : f32
    %162 = vector.broadcast %cst_67 : f32 to vector<8x128xf32>
    %163 = arith.subf %162, %159 : vector<8x128xf32>
    %164 = math.exp %163 : vector<8x128xf32>
    %165 = arith.mulf %161, %164 : vector<8x128xf32>
    %c0_68 = arith.constant 0 : index
    %c0_69 = arith.constant 0 : index
    %166 = vector.load %arg6[%c0_68, %c0_69] : memref<16x128xf32, #tpu.memory_space<vmem>>, vector<8x128xf32>
    tpu.vector_store %arg6[%c0_68, %c0_69], %145 {strides = array<i32>} : memref<16x128xf32, #tpu.memory_space<vmem>>, vector<8x128xf32>,
    %c8_70 = arith.constant 8 : index
    %c0_71 = arith.constant 0 : index
    %167 = vector.load %arg6[%c8_70, %c0_71] : memref<16x128xf32, #tpu.memory_space<vmem>>, vector<8x128xf32>
    tpu.vector_store %arg6[%c8_70, %c0_71], %165 {strides = array<i32>} : memref<16x128xf32, #tpu.memory_space<vmem>>, vector<8x128xf32>,
    return
  }
  func.func @transform_0(%arg0: i32) -> (i32, i32) {
    %c0_i32 = arith.constant 0 : i32
    %c0_i32_0 = arith.constant 0 : i32
    return %c0_i32, %arg0 : i32, i32
  }
  func.func @transform_1(%arg0: i32) -> (i32, i32) {
    %c0_i32 = arith.constant 0 : i32
    %c0_i32_0 = arith.constant 0 : i32
    %c0_i32_1 = arith.constant 0 : i32
    return %c0_i32, %c0_i32_0 : i32, i32
  }
  func.func @transform_2(%arg0: i32) -> (i32, i32) {
    %c0_i32 = arith.constant 0 : i32
    %c0_i32_0 = arith.constant 0 : i32
    %c0_i32_1 = arith.constant 0 : i32
    return %c0_i32, %c0_i32_0 : i32, i32
  }
  func.func @transform_3(%arg0: i32) -> (i32, i32) {
    %c0_i32 = arith.constant 0 : i32
    %c0_i32_0 = arith.constant 0 : i32
    %c0_i32_1 = arith.constant 0 : i32
    return %c0_i32, %c0_i32_0 : i32, i32
  }
  func.func @transform_4(%arg0: i32) -> (i32, i32) {
    %c0_i32 = arith.constant 0 : i32
    %c0_i32_0 = arith.constant 0 : i32
    %c0_i32_1 = arith.constant 0 : i32
    return %c0_i32, %c0_i32_0 : i32, i32
  }
  func.func @transform_5(%arg0: i32) -> (i32, i32) {
    %c0_i32 = arith.constant 0 : i32
    %c0_i32_0 = arith.constant 0 : i32
    return %c0_i32, %arg0 : i32, i32
  }
}

</mosaic_0001>

<llo_original>
// kernel: tpu_custom_call.1
$region0: #{tpu_custom_call.1}
  #allocation0 [shape = 'u32[]', space=smem, size = 0x4, offset = 0x4, fixed_abs, tag = 'smem constant byte address 0x4 - core index']
  #allocation1 [shape = 'u32[144,128]{1,0:T(1,128)}', space=vmem, size = 0x12000, scoped, tag = 'internal scratch']
  %s0 = inlined_call_operand.vmem [shape: f32[48,128], index: 0, kind: input, shape index: {}]
  %s1 = inlined_call_operand.vmem [shape: bf16[256,32], index: 1, kind: input, shape index: {}]
  %s2 = inlined_call_operand.vmem [shape: bf16[128,8], index: 2, kind: input, shape index: {}]
  %s3 = inlined_call_operand.vmem [shape: bf16[64,32], index: 3, kind: input, shape index: {}]
  %s4 = inlined_call_operand.vmem [shape: f32[320,1], index: 4, kind: input, shape index: {}]
  %s5 = inlined_call_operand.hbm [shape: f32[16,128], index: 5, kind: output, shape index: {}]
  %s6 = sld [smem:[#allocation0]]
  $region30: #{tpu_custom_call.1} parent=0
    _
  %s8 = ssub.s32 1, %s6
  %s9 = scalar_select 0, %s8, %s6
  $region1: #{tpu_custom_call.1} parent=0
    #allocation2 [shape = 'u8[8192]{0}', space=vmem, size = 0x2000, scoped, tag = 'output window, operand 0, single buffered']
    #allocation3 [shape = 's32[1]{0}', space=sflag, size = 0x4, scoped, tag = 'scoped memory for tpu_custom_call.1']
    %10 = vsyncpa [#allocation3], 0
    // Predicated region
    $region2: #{tpu_custom_call.1} parent=1 // pred_check
      _
    $region3: #{tpu_custom_call.1} parent=1 // pred_check_branch
      %12 = sbr.rel (0) target = $region5
    $region4: #{tpu_custom_call.1} parent=1 // pred_region
      _
    $region5: #{tpu_custom_call.1} parent=1 // pred_fallthru
      _
    // Predicated region
    $region6: #{tpu_custom_call.1} parent=1 // pred_check
      _
    $region7: #{tpu_custom_call.1} parent=1 // pred_check_branch
      %14 = sbr.rel (0) target = $region9
    $region8: #{tpu_custom_call.1} parent=1 // pred_region
      _
    $region9: #{tpu_custom_call.1} parent=1 // pred_fallthru
      _
    // Predicated region
    $region10: #{tpu_custom_call.1} parent=1 // pred_check
      _
    $region11: #{tpu_custom_call.1} parent=1 // pred_check_branch
      %16 = sbr.rel (0) target = $region13
    $region12: #{tpu_custom_call.1} parent=1 // pred_region
      _
    $region13: #{tpu_custom_call.1} parent=1 // pred_fallthru
      _
    // Predicated region
    $region14: #{tpu_custom_call.1} parent=1 // pred_check
      _
    $region15: #{tpu_custom_call.1} parent=1 // pred_check_branch
      %18 = sbr.rel (0) target = $region17
    $region16: #{tpu_custom_call.1} parent=1 // pred_region
      _
    $region17: #{tpu_custom_call.1} parent=1 // pred_fallthru
      _
    // Predicated region
    $region18: #{tpu_custom_call.1} parent=1 // pred_check
      _
    $region19: #{tpu_custom_call.1} parent=1 // pred_check_branch
      %20 = sbr.rel (0) target = $region21
    $region20: #{tpu_custom_call.1} parent=1 // pred_region
      _
    $region21: #{tpu_custom_call.1} parent=1 // pred_fallthru
      _
    %v22 = vld [vmem:[%s0 + $0x10] sm:$0xff]
    %v23 = vld [vmem:[%s0 + $0x18] sm:$0xff]
    %v24 = vld [vmem:[%s0 + $0x20] sm:$0xff]
    %v25 = vld [vmem:[%s0 + $0x28] sm:$0xff]
    %v26 = vpack.c.bf16 %v23, %v22
    %v27 = vpack.c.bf16 %v25, %v24
    %v28 = vld [vmem:[%s1] sm:$0xf]
    %v29 = vld [vmem:[%s1 + $0x4] sm:$0xf]
    %v30 = vld [vmem:[%s1 + $0x8] sm:$0xf]
    %v31 = vld [vmem:[%s1 + $0xc] sm:$0xf]
    %v32 = vld [vmem:[%s1 + $0x10] sm:$0xf]
    %v33 = vld [vmem:[%s1 + $0x14] sm:$0xf]
    %v34 = vld [vmem:[%s1 + $0x18] sm:$0xf]
    %v35 = vld [vmem:[%s1 + $0x1c] sm:$0xf]
    %v36 = vld [vmem:[%s1 + $0x20] sm:$0xf]
    %v37 = vld [vmem:[%s1 + $0x24] sm:$0xf]
    %v38 = vld [vmem:[%s1 + $0x28] sm:$0xf]
    %v39 = vld [vmem:[%s1 + $0x2c] sm:$0xf]
    %v40 = vld [vmem:[%s1 + $0x30] sm:$0xf]
    %v41 = vld [vmem:[%s1 + $0x34] sm:$0xf]
    %v42 = vld [vmem:[%s1 + $0x38] sm:$0xf]
    %v43 = vld [vmem:[%s1 + $0x3c] sm:$0xf]
    %v44 = vld [vmem:[%s1 + $0x40] sm:$0xf]
    %v45 = vld [vmem:[%s1 + $0x44] sm:$0xf]
    %v46 = vld [vmem:[%s1 + $0x48] sm:$0xf]
    %v47 = vld [vmem:[%s1 + $0x4c] sm:$0xf]
    %v48 = vld [vmem:[%s1 + $0x50] sm:$0xf]
    %v49 = vld [vmem:[%s1 + $0x54] sm:$0xf]
    %v50 = vld [vmem:[%s1 + $0x58] sm:$0xf]
    %v51 = vld [vmem:[%s1 + $0x5c] sm:$0xf]
    %v52 = vld [vmem:[%s1 + $0x60] sm:$0xf]
    %v53 = vld [vmem:[%s1 + $0x64] sm:$0xf]
    %v54 = vld [vmem:[%s1 + $0x68] sm:$0xf]
    %v55 = vld [vmem:[%s1 + $0x6c] sm:$0xf]
    %v56 = vld [vmem:[%s1 + $0x70] sm:$0xf]
    %v57 = vld [vmem:[%s1 + $0x74] sm:$0xf]
    %v58 = vld [vmem:[%s1 + $0x78] sm:$0xf]
    %v59 = vld [vmem:[%s1 + $0x7c] sm:$0xf]
    %v92 = vunpack.c.l.b16 %v28
    %v93 = vunpack.c.l.b16 %v29
    %v94 = vunpack.c.l.b16 %v30
    %v95 = vunpack.c.l.b16 %v31
    %v96 = vunpack.c.l.b16 %v32
    %v97 = vunpack.c.l.b16 %v33
    %v98 = vunpack.c.l.b16 %v34
    %v99 = vunpack.c.l.b16 %v35
    %v100 = vunpack.c.l.b16 %v36
    %v101 = vunpack.c.l.b16 %v37
    %v102 = vunpack.c.l.b16 %v38
    %v103 = vunpack.c.l.b16 %v39
    %v104 = vunpack.c.l.b16 %v40
    %v105 = vunpack.c.l.b16 %v41
    %v106 = vunpack.c.l.b16 %v42
    %v107 = vunpack.c.l.b16 %v43
    %v108 = vunpack.c.l.b16 %v44
    %v109 = vunpack.c.l.b16 %v45
    %v110 = vunpack.c.l.b16 %v46
    %v111 = vunpack.c.l.b16 %v47
    %v112 = vunpack.c.l.b16 %v48
    %v113 = vunpack.c.l.b16 %v49
    %v114 = vunpack.c.l.b16 %v50
    %v115 = vunpack.c.l.b16 %v51
    %v116 = vunpack.c.l.b16 %v52
    %v117 = vunpack.c.l.b16 %v53
    %v118 = vunpack.c.l.b16 %v54
    %v119 = vunpack.c.l.b16 %v55
    %v120 = vunpack.c.l.b16 %v56
    %v121 = vunpack.c.l.b16 %v57
    %v122 = vunpack.c.l.b16 %v58
    %v123 = vunpack.c.l.b16 %v59
    %v124 = vpack.c.b16 %v93, %v92
    %v125 = vpack.c.b16 %v95, %v94
    %v126 = vpack.c.b16 %v97, %v96
    %v127 = vpack.c.b16 %v99, %v98
    %v128 = vpack.c.b16 %v101, %v100
    %v129 = vpack.c.b16 %v103, %v102
    %v130 = vpack.c.b16 %v105, %v104
    %v131 = vpack.c.b16 %v107, %v106
    %v132 = vpack.c.b16 %v109, %v108
    %v133 = vpack.c.b16 %v111, %v110
    %v134 = vpack.c.b16 %v113, %v112
    %v135 = vpack.c.b16 %v115, %v114
    %v136 = vpack.c.b16 %v117, %v116
    %v137 = vpack.c.b16 %v119, %v118
    %v138 = vpack.c.b16 %v121, %v120
    %v139 = vpack.c.b16 %v123, %v122
    %vm140 = vcmask 261120
    %v142 = vsel %vm140, %v124, 0
    %v145 = vsel %vm140, %v125, 0
    %v148 = vsel %vm140, %v126, 0
    %v151 = vsel %vm140, %v127, 0
    %v154 = vsel %vm140, %v128, 0
    %v157 = vsel %vm140, %v129, 0
    %v160 = vsel %vm140, %v130, 0
    %v163 = vsel %vm140, %v131, 0
    %v166 = vsel %vm140, %v132, 0
    %v169 = vsel %vm140, %v133, 0
    %v172 = vsel %vm140, %v134, 0
    %v175 = vsel %vm140, %v135, 0
    %v178 = vsel %vm140, %v136, 0
    %v181 = vsel %vm140, %v137, 0
    %v184 = vsel %vm140, %v138, 0
    %v187 = vsel %vm140, %v139, 0
    %189 = vmatprep.subr.bf16.mxu0 0
    %190 = vmatpush1.bf16.msra.mxu0 0
    %191 = vmatprep.subr.bf16.mxu0 0
    %192 = vmatpush1.bf16.msra.mxu0 0
    %193 = vmatprep.subr.bf16.mxu0 0
    %194 = vmatpush1.bf16.msra.mxu0 0
    %195 = vmatprep.subr.bf16.mxu0 0
    %196 = vmatpush1.bf16.msra.mxu0 0
    %197 = vmatprep.subr.bf16.mxu0 0
    %198 = vmatpush1.bf16.msra.mxu0 0
    %199 = vmatprep.subr.bf16.mxu0 0
    %200 = vmatpush1.bf16.msra.mxu0 0
    %201 = vmatprep.subr.bf16.mxu0 0
    %202 = vmatpush1.bf16.msra.mxu0 %v27
    %203 = vmatprep.subr.bf16.mxu0 0
    %204 = vmatpush1.bf16.msra.mxu0 %v26
    %205 = vmatprep.subr.bf16.mxu0 0
    %206 = vmatpush2.bf16.msra.mxu0 0
    %207 = vmatprep.subr.bf16.mxu0 0
    %208 = vmatpush2.bf16.msra.mxu0 0
    %209 = vmatprep.subr.bf16.mxu0 0
    %210 = vmatpush2.bf16.msra.mxu0 0
    %211 = vmatprep.subr.bf16.mxu0 0
    %212 = vmatpush2.bf16.msra.mxu0 0
    %213 = vmatprep.subr.bf16.mxu0 0
    %214 = vmatpush2.bf16.msra.mxu0 0
    %215 = vmatprep.subr.bf16.mxu0 0
    %216 = vmatpush2.bf16.msra.mxu0 0
    %217 = vmatprep.subr.bf16.mxu0 0
    %218 = vmatpush2.bf16.msra.mxu0 0
    %219 = vmatprep.subr.bf16.mxu0 0
    %220 = vmatpush2.bf16.msra.mxu0 0
    %221 = vmatprep.mubr.bf16.mxu0 0
    %222 = vmatmul.mubr.bf16.gmra.mxu0 %v142
    %v223 = vpop.f32.mrf.mxu0
    %v224 = vadd.f32 0.0, %v223
    %v225 = vpop.f32.mrf.mxu0
    %v226 = vpop.f32.mrf.mxu0
    %v227 = vadd.f32 0.0, %v226
    %v228 = vpop.f32.mrf.mxu0
    %229 = vmatprep.mubr.bf16.mxu0 0
    %230 = vmatmul.mubr.bf16.gmra.mxu0 %v145
    %v231 = vpop.f32.mrf.mxu0
    %v232 = vadd.f32 0.0, %v231
    %v233 = vpop.f32.mrf.mxu0
    %v234 = vpop.f32.mrf.mxu0
    %v235 = vadd.f32 0.0, %v234
    %v236 = vpop.f32.mrf.mxu0
    %237 = vmatprep.mubr.bf16.mxu0 0
    %238 = vmatmul.mubr.bf16.gmra.mxu0 %v148
    %v239 = vpop.f32.mrf.mxu0
    %v240 = vadd.f32 0.0, %v239
    %v241 = vpop.f32.mrf.mxu0
    %v242 = vpop.f32.mrf.mxu0
    %v243 = vadd.f32 0.0, %v242
    %v244 = vpop.f32.mrf.mxu0
    %245 = vmatprep.mubr.bf16.mxu0 0
    %246 = vmatmul.mubr.bf16.gmra.mxu0 %v151
    %v247 = vpop.f32.mrf.mxu0
    %v248 = vadd.f32 0.0, %v247
    %v249 = vpop.f32.mrf.mxu0
    %v250 = vpop.f32.mrf.mxu0
    %v251 = vadd.f32 0.0, %v250
    %v252 = vpop.f32.mrf.mxu0
    %253 = vmatprep.mubr.bf16.mxu0 0
    %254 = vmatmul.mubr.bf16.gmra.mxu0 %v154
    %v255 = vpop.f32.mrf.mxu0
    %v256 = vadd.f32 0.0, %v255
    %v257 = vpop.f32.mrf.mxu0
    %v258 = vpop.f32.mrf.mxu0
    %v259 = vadd.f32 0.0, %v258
    %v260 = vpop.f32.mrf.mxu0
    %261 = vmatprep.mubr.bf16.mxu0 0
    %262 = vmatmul.mubr.bf16.gmra.mxu0 %v157
    %v263 = vpop.f32.mrf.mxu0
    %v264 = vadd.f32 0.0, %v263
    %v265 = vpop.f32.mrf.mxu0
    %v266 = vpop.f32.mrf.mxu0
    %v267 = vadd.f32 0.0, %v266
    %v268 = vpop.f32.mrf.mxu0
    %269 = vmatprep.mubr.bf16.mxu0 0
    %270 = vmatmul.mubr.bf16.gmra.mxu0 %v160
    %v271 = vpop.f32.mrf.mxu0
    %v272 = vadd.f32 0.0, %v271
    %v273 = vpop.f32.mrf.mxu0
    %v274 = vpop.f32.mrf.mxu0
    %v275 = vadd.f32 0.0, %v274
    %v276 = vpop.f32.mrf.mxu0
    %277 = vmatprep.mubr.bf16.mxu0 0
    %278 = vmatmul.mubr.bf16.gmra.mxu0 %v163
    %v279 = vpop.f32.mrf.mxu0
    %v280 = vadd.f32 0.0, %v279
    %v281 = vpop.f32.mrf.mxu0
    %v282 = vpop.f32.mrf.mxu0
    %v283 = vadd.f32 0.0, %v282
    %v284 = vpop.f32.mrf.mxu0
    %285 = vmatprep.mubr.bf16.mxu0 0
    %286 = vmatmul.mubr.bf16.gmra.mxu0 %v166
    %v287 = vpop.f32.mrf.mxu0
    %v288 = vadd.f32 0.0, %v287
    %v289 = vpop.f32.mrf.mxu0
    %v290 = vpop.f32.mrf.mxu0
    %v291 = vadd.f32 0.0, %v290
    %v292 = vpop.f32.mrf.mxu0
    %293 = vmatprep.mubr.bf16.mxu0 0
    %294 = vmatmul.mubr.bf16.gmra.mxu0 %v169
    %v295 = vpop.f32.mrf.mxu0
    %v296 = vadd.f32 0.0, %v295
    %v297 = vpop.f32.mrf.mxu0
    %v298 = vpop.f32.mrf.mxu0
    %v299 = vadd.f32 0.0, %v298
    %v300 = vpop.f32.mrf.mxu0
    %301 = vmatprep.mubr.bf16.mxu0 0
    %302 = vmatmul.mubr.bf16.gmra.mxu0 %v172
    %v303 = vpop.f32.mrf.mxu0
    %v304 = vadd.f32 0.0, %v303
    %v305 = vpop.f32.mrf.mxu0
    %v306 = vpop.f32.mrf.mxu0
    %v307 = vadd.f32 0.0, %v306
    %v308 = vpop.f32.mrf.mxu0
    %309 = vmatprep.mubr.bf16.mxu0 0
    %310 = vmatmul.mubr.bf16.gmra.mxu0 %v175
    %v311 = vpop.f32.mrf.mxu0
    %v312 = vadd.f32 0.0, %v311
    %v313 = vpop.f32.mrf.mxu0
    %v314 = vpop.f32.mrf.mxu0
    %v315 = vadd.f32 0.0, %v314
    %v316 = vpop.f32.mrf.mxu0
    %317 = vmatprep.mubr.bf16.mxu0 0
    %318 = vmatmul.mubr.bf16.gmra.mxu0 %v178
    %v319 = vpop.f32.mrf.mxu0
    %v320 = vadd.f32 0.0, %v319
    %v321 = vpop.f32.mrf.mxu0
    %v322 = vpop.f32.mrf.mxu0
    %v323 = vadd.f32 0.0, %v322
    %v324 = vpop.f32.mrf.mxu0
    %325 = vmatprep.mubr.bf16.mxu0 0
    %326 = vmatmul.mubr.bf16.gmra.mxu0 %v181
    %v327 = vpop.f32.mrf.mxu0
    %v328 = vadd.f32 0.0, %v327
    %v329 = vpop.f32.mrf.mxu0
    %v330 = vpop.f32.mrf.mxu0
    %v331 = vadd.f32 0.0, %v330
    %v332 = vpop.f32.mrf.mxu0
    %333 = vmatprep.mubr.bf16.mxu0 0
    %334 = vmatmul.mubr.bf16.gmra.mxu0 %v184
    %v335 = vpop.f32.mrf.mxu0
    %v336 = vadd.f32 0.0, %v335
    %v337 = vpop.f32.mrf.mxu0
    %v338 = vpop.f32.mrf.mxu0
    %v339 = vadd.f32 0.0, %v338
    %v340 = vpop.f32.mrf.mxu0
    %341 = vmatprep.mubr.bf16.mxu0 0
    %342 = vmatmul.mubr.bf16.gmra.mxu0 %v187
    %v343 = vpop.f32.mrf.mxu0
    %v344 = vadd.f32 0.0, %v343
    %v345 = vpop.f32.mrf.mxu0
    %v346 = vpop.f32.mrf.mxu0
    %v347 = vadd.f32 0.0, %v346
    %v348 = vpop.f32.mrf.mxu0
    %349 = vdwg.mxu0
    %v350 = vld [vmem:[%s4] sm:$0xff]
    %v351 = vld [vmem:[%s4 + $0x8] sm:$0xff]
    %v352 = vld [vmem:[%s4 + $0x10] sm:$0xff]
    %v353 = vld [vmem:[%s4 + $0x18] sm:$0xff]
    %v354 = vld [vmem:[%s4 + $0x20] sm:$0xff]
    %v355 = vld [vmem:[%s4 + $0x28] sm:$0xff]
    %v356 = vld [vmem:[%s4 + $0x30] sm:$0xff]
    %v357 = vld [vmem:[%s4 + $0x38] sm:$0xff]
    %v358 = vld [vmem:[%s4 + $0x40] sm:$0xff]
    %v359 = vld [vmem:[%s4 + $0x48] sm:$0xff]
    %v360 = vld [vmem:[%s4 + $0x50] sm:$0xff]
    %v361 = vld [vmem:[%s4 + $0x58] sm:$0xff]
    %v362 = vld [vmem:[%s4 + $0x60] sm:$0xff]
    %v363 = vld [vmem:[%s4 + $0x68] sm:$0xff]
    %v364 = vld [vmem:[%s4 + $0x70] sm:$0xff]
    %v365 = vld [vmem:[%s4 + $0x78] sm:$0xff]
    %v366 = vld [vmem:[%s4 + $0x80] sm:$0xff]
    %v367 = vld [vmem:[%s4 + $0x88] sm:$0xff]
    %v368 = vld [vmem:[%s4 + $0x90] sm:$0xff]
    %v369 = vld [vmem:[%s4 + $0x98] sm:$0xff]
    %v370 = vld [vmem:[%s4 + $0xa0] sm:$0xff]
    %v371 = vld [vmem:[%s4 + $0xa8] sm:$0xff]
    %v372 = vld [vmem:[%s4 + $0xb0] sm:$0xff]
    %v373 = vld [vmem:[%s4 + $0xb8] sm:$0xff]
    %v374 = vld [vmem:[%s4 + $0xc0] sm:$0xff]
    %v375 = vld [vmem:[%s4 + $0xc8] sm:$0xff]
    %v376 = vld [vmem:[%s4 + $0xd0] sm:$0xff]
    %v377 = vld [vmem:[%s4 + $0xd8] sm:$0xff]
    %v378 = vld [vmem:[%s4 + $0xe0] sm:$0xff]
    %v379 = vld [vmem:[%s4 + $0xe8] sm:$0xff]
    %v380 = vld [vmem:[%s4 + $0xf0] sm:$0xff]
    %v381 = vld [vmem:[%s4 + $0xf8] sm:$0xff]
    %383 = vset.pattern.permute.xlu0 0
    %384 = vperm.xlu0 %383, %v350
    %v385 = vpop.permute.xlu0 %384
    %388 = vset.pattern.permute.xlu0 0
    %389 = vperm.xlu0 %388, %v351
    %v390 = vpop.permute.xlu0 %389
    %393 = vset.pattern.permute.xlu0 0
    %394 = vperm.xlu0 %393, %v352
    %v395 = vpop.permute.xlu0 %394
    %398 = vset.pattern.permute.xlu0 0
    %399 = vperm.xlu0 %398, %v353
    %v400 = vpop.permute.xlu0 %399
    %403 = vset.pattern.permute.xlu0 0
    %404 = vperm.xlu0 %403, %v354
    %v405 = vpop.permute.xlu0 %404
    %408 = vset.pattern.permute.xlu0 0
    %409 = vperm.xlu0 %408, %v355
    %v410 = vpop.permute.xlu0 %409
    %413 = vset.pattern.permute.xlu0 0
    %414 = vperm.xlu0 %413, %v356
    %v415 = vpop.permute.xlu0 %414
    %418 = vset.pattern.permute.xlu0 0
    %419 = vperm.xlu0 %418, %v357
    %v420 = vpop.permute.xlu0 %419
    %423 = vset.pattern.permute.xlu0 0
    %424 = vperm.xlu0 %423, %v358
    %v425 = vpop.permute.xlu0 %424
    %428 = vset.pattern.permute.xlu0 0
    %429 = vperm.xlu0 %428, %v359
    %v430 = vpop.permute.xlu0 %429
    %433 = vset.pattern.permute.xlu0 0
    %434 = vperm.xlu0 %433, %v360
    %v435 = vpop.permute.xlu0 %434
    %438 = vset.pattern.permute.xlu0 0
    %439 = vperm.xlu0 %438, %v361
    %v440 = vpop.permute.xlu0 %439
    %443 = vset.pattern.permute.xlu0 0
    %444 = vperm.xlu0 %443, %v362
    %v445 = vpop.permute.xlu0 %444
    %448 = vset.pattern.permute.xlu0 0
    %449 = vperm.xlu0 %448, %v363
    %v450 = vpop.permute.xlu0 %449
    %453 = vset.pattern.permute.xlu0 0
    %454 = vperm.xlu0 %453, %v364
    %v455 = vpop.permute.xlu0 %454
    %458 = vset.pattern.permute.xlu0 0
    %459 = vperm.xlu0 %458, %v365
    %v460 = vpop.permute.xlu0 %459
    %v462 = vadd.f32 %v224, %v385
    %v463 = vadd.f32 %v227, %v390
    %v464 = vadd.f32 %v232, %v395
    %v465 = vadd.f32 %v235, %v400
    %v466 = vadd.f32 %v240, %v405
    %v467 = vadd.f32 %v243, %v410
    %v468 = vadd.f32 %v248, %v415
    %v469 = vadd.f32 %v251, %v420
    %v470 = vadd.f32 %v256, %v425
    %v471 = vadd.f32 %v259, %v430
    %v472 = vadd.f32 %v264, %v435
    %v473 = vadd.f32 %v267, %v440
    %v474 = vadd.f32 %v272, %v445
    %v475 = vadd.f32 %v275, %v450
    %v476 = vadd.f32 %v280, %v455
    %v477 = vadd.f32 %v283, %v460
    %479 = vset.pattern.permute.xlu0 0
    %480 = vperm.xlu0 %479, %v366
    %v481 = vpop.permute.xlu0 %480
    %484 = vset.pattern.permute.xlu0 0
    %485 = vperm.xlu0 %484, %v367
    %v486 = vpop.permute.xlu0 %485
    %489 = vset.pattern.permute.xlu0 0
    %490 = vperm.xlu0 %489, %v368
    %v491 = vpop.permute.xlu0 %490
    %494 = vset.pattern.permute.xlu0 0
    %495 = vperm.xlu0 %494, %v369
    %v496 = vpop.permute.xlu0 %495
    %499 = vset.pattern.permute.xlu0 0
    %500 = vperm.xlu0 %499, %v370
    %v501 = vpop.permute.xlu0 %500
    %504 = vset.pattern.permute.xlu0 0
    %505 = vperm.xlu0 %504, %v371
    %v506 = vpop.permute.xlu0 %505
    %509 = vset.pattern.permute.xlu0 0
    %510 = vperm.xlu0 %509, %v372
    %v511 = vpop.permute.xlu0 %510
    %514 = vset.pattern.permute.xlu0 0
    %515 = vperm.xlu0 %514, %v373
    %v516 = vpop.permute.xlu0 %515
    %519 = vset.pattern.permute.xlu0 0
    %520 = vperm.xlu0 %519, %v374
    %v521 = vpop.permute.xlu0 %520
    %524 = vset.pattern.permute.xlu0 0
    %525 = vperm.xlu0 %524, %v375
    %v526 = vpop.permute.xlu0 %525
    %529 = vset.pattern.permute.xlu0 0
    %530 = vperm.xlu0 %529, %v376
    %v531 = vpop.permute.xlu0 %530
    %534 = vset.pattern.permute.xlu0 0
    %535 = vperm.xlu0 %534, %v377
    %v536 = vpop.permute.xlu0 %535
    %539 = vset.pattern.permute.xlu0 0
    %540 = vperm.xlu0 %539, %v378
    %v541 = vpop.permute.xlu0 %540
    %544 = vset.pattern.permute.xlu0 0
    %545 = vperm.xlu0 %544, %v379
    %v546 = vpop.permute.xlu0 %545
    %549 = vset.pattern.permute.xlu0 0
    %550 = vperm.xlu0 %549, %v380
    %v551 = vpop.permute.xlu0 %550
    %554 = vset.pattern.permute.xlu0 0
    %555 = vperm.xlu0 %554, %v381
    %v556 = vpop.permute.xlu0 %555
    %v558 = vadd.f32 %v288, %v481
    %v559 = vadd.f32 %v291, %v486
    %v560 = vadd.f32 %v296, %v491
    %v561 = vadd.f32 %v299, %v496
    %v562 = vadd.f32 %v304, %v501
    %v563 = vadd.f32 %v307, %v506
    %v564 = vadd.f32 %v312, %v511
    %v565 = vadd.f32 %v315, %v516
    %v566 = vadd.f32 %v320, %v521
    %v567 = vadd.f32 %v323, %v526
    %v568 = vadd.f32 %v328, %v531
    %v569 = vadd.f32 %v331, %v536
    %v570 = vadd.f32 %v336, %v541
    %v571 = vadd.f32 %v339, %v546
    %v572 = vadd.f32 %v344, %v551
    %v573 = vadd.f32 %v347, %v556
    %v574 = vld [vmem:[%s0] sm:$0xff]
    %v575 = vld [vmem:[%s0 + $0x8] sm:$0xff]
    %v576 = vld [vmem:[%s2] sm:$0xf]
    %v577 = vld [vmem:[%s2 + $0x4] sm:$0xf]
    %v578 = vld [vmem:[%s2 + $0x8] sm:$0xf]
    %v579 = vld [vmem:[%s2 + $0xc] sm:$0xf]
    %v580 = vpack.c.bf16 %v574, %v574
    %v585 = vunpack.c.l.b16 %v576
    %v586 = vunpack.c.l.b16 %v577
    %v587 = vunpack.c.l.b16 %v578
    %v588 = vunpack.c.l.b16 %v579
    %v589 = vpack.c.b16 %v586, %v585
    %v590 = vpack.c.b16 %v588, %v587
    %vm591 = vcmask 64512
    %v593 = vsel %vm591, %v589, 0
    %v596 = vsel %vm591, %v590, 0
    %vm598 = vcmask 1043456
    %v600 = vsel %vm598, %v580, 0
    %602 = vmatprep.subr.bf16.mxu0 0
    %603 = vmatpush1.bf16.msra.mxu0 0
    %604 = vmatprep.subr.bf16.mxu0 0
    %605 = vmatpush1.bf16.msra.mxu0 0
    %606 = vmatprep.subr.bf16.mxu0 0
    %607 = vmatpush1.bf16.msra.mxu0 0
    %608 = vmatprep.subr.bf16.mxu0 0
    %609 = vmatpush1.bf16.msra.mxu0 0
    %610 = vmatprep.subr.bf16.mxu0 0
    %611 = vmatpush1.bf16.msra.mxu0 0
    %612 = vmatprep.subr.bf16.mxu0 0
    %613 = vmatpush1.bf16.msra.mxu0 0
    %614 = vmatprep.subr.bf16.mxu0 0
    %615 = vmatpush1.bf16.msra.mxu0 0
    %616 = vmatprep.subr.bf16.mxu0 0
    %617 = vmatpush1.bf16.msra.mxu0 %v600
    %618 = vmatprep.subr.bf16.mxu0 0
    %619 = vmatpush2.bf16.msra.mxu0 0
    %620 = vmatprep.subr.bf16.mxu0 0
    %621 = vmatpush2.bf16.msra.mxu0 0
    %622 = vmatprep.subr.bf16.mxu0 0
    %623 = vmatpush2.bf16.msra.mxu0 0
    %624 = vmatprep.subr.bf16.mxu0 0
    %625 = vmatpush2.bf16.msra.mxu0 0
    %626 = vmatprep.subr.bf16.mxu0 0
    %627 = vmatpush2.bf16.msra.mxu0 0
    %628 = vmatprep.subr.bf16.mxu0 0
    %629 = vmatpush2.bf16.msra.mxu0 0
    %630 = vmatprep.subr.bf16.mxu0 0
    %631 = vmatpush2.bf16.msra.mxu0 0
    %632 = vmatprep.subr.bf16.mxu0 0
    %633 = vmatpush2.bf16.msra.mxu0 0
    %634 = vmatprep.mubr.bf16.mxu0 0
    %635 = vmatmul.mubr.bf16.gmra.mxu0 %v593
    %v636 = vpop.f32.mrf.mxu0
    %v637 = vadd.f32 %v462, %v636
    %v638 = vpop.f32.mrf.mxu0
    %v639 = vpop.f32.mrf.mxu0
    %v640 = vadd.f32 %v463, %v639
    %v641 = vpop.f32.mrf.mxu0
    %642 = vmatprep.mubr.bf16.mxu0 0
    %643 = vmatmul.mubr.bf16.gmra.mxu0 %v596
    %v644 = vpop.f32.mrf.mxu0
    %v645 = vadd.f32 %v464, %v644
    %v646 = vpop.f32.mrf.mxu0
    %v647 = vpop.f32.mrf.mxu0
    %v648 = vadd.f32 %v465, %v647
    %v649 = vpop.f32.mrf.mxu0
    %650 = vdwg.mxu0
    %v651 = vtanh.pop %v637
    %v652 = vtanh.pop %v640
    %v653 = vtanh.pop %v645
    %v654 = vtanh.pop %v648
    %v655 = vld [vmem:[%s3] sm:$0xf]
    %v656 = vld [vmem:[%s3 + $0x4] sm:$0xf]
    %v657 = vld [vmem:[%s4 + $0x100] sm:$0xff]
    %v658 = vld [vmem:[%s4 + $0x108] sm:$0xff]
    %v659 = vpack.c.bf16 %v652, %v651
    %v660 = vpack.c.bf16 %v654, %v653
    %662 = vset.pattern.permute.xlu0 0
    %663 = vperm.xlu0 %662, %v657
    %v664 = vpop.permute.xlu0 %663
    %667 = vset.pattern.permute.xlu0 0
    %668 = vperm.xlu0 %667, %v658
    %v669 = vpop.permute.xlu0 %668
    %v673 = vunpack.c.l.b16 %v655
    %v674 = vunpack.c.l.b16 %v656
    %v675 = vpack.c.b16 %v674, %v673
    %v677 = vsel %vm140, %v675, 0
    %679 = vmatprep.subr.bf16.mxu0 0
    %680 = vmatpush1.bf16.msra.mxu0 0
    %681 = vmatprep.subr.bf16.mxu0 0
    %682 = vmatpush1.bf16.msra.mxu0 0
    %683 = vmatprep.subr.bf16.mxu0 0
    %684 = vmatpush1.bf16.msra.mxu0 0
    %685 = vmatprep.subr.bf16.mxu0 0
    %686 = vmatpush1.bf16.msra.mxu0 0
    %687 = vmatprep.subr.bf16.mxu0 0
    %688 = vmatpush1.bf16.msra.mxu0 0
    %689 = vmatprep.subr.bf16.mxu0 0
    %690 = vmatpush1.bf16.msra.mxu0 0
    %691 = vmatprep.subr.bf16.mxu0 0
    %692 = vmatpush1.bf16.msra.mxu0 %v660
    %693 = vmatprep.subr.bf16.mxu0 0
    %694 = vmatpush1.bf16.msra.mxu0 %v659
    %695 = vmatprep.subr.bf16.mxu0 0
    %696 = vmatpush2.bf16.msra.mxu0 0
    %697 = vmatprep.subr.bf16.mxu0 0
    %698 = vmatpush2.bf16.msra.mxu0 0
    %699 = vmatprep.subr.bf16.mxu0 0
    %700 = vmatpush2.bf16.msra.mxu0 0
    %701 = vmatprep.subr.bf16.mxu0 0
    %702 = vmatpush2.bf16.msra.mxu0 0
    %703 = vmatprep.subr.bf16.mxu0 0
    %704 = vmatpush2.bf16.msra.mxu0 0
    %705 = vmatprep.subr.bf16.mxu0 0
    %706 = vmatpush2.bf16.msra.mxu0 0
    %707 = vmatprep.subr.bf16.mxu0 0
    %708 = vmatpush2.bf16.msra.mxu0 0
    %709 = vmatprep.subr.bf16.mxu0 0
    %710 = vmatpush2.bf16.msra.mxu0 0
    %711 = vmatprep.mubr.bf16.mxu0 0
    %712 = vmatmul.mubr.bf16.gmra.mxu0 %v677
    %v713 = vpop.f32.mrf.mxu0
    %v714 = vadd.f32 %v664, %v713
    %v715 = vpop.f32.mrf.mxu0
    %v716 = vpop.f32.mrf.mxu0
    %v717 = vadd.f32 %v669, %v716
    %v718 = vpop.f32.mrf.mxu0
    %719 = vdwg.mxu0
    %v720 = vtanh.pop %v714
    %v721 = vmul.f32 %v720, 1.442695
    %v722 = vpow.pop %v721
    %v723 = vmul.f32 %v575, %v722
    %v724 = vadd.f32 %v723, %v717
    %v725 = vld [vmem:[%s2 + $0x10] sm:$0xf]
    %v726 = vld [vmem:[%s2 + $0x14] sm:$0xf]
    %v727 = vld [vmem:[%s2 + $0x18] sm:$0xf]
    %v728 = vld [vmem:[%s2 + $0x1c] sm:$0xf]
    %v729 = vpack.c.bf16 %v724, %v724
    %v734 = vunpack.c.l.b16 %v725
    %v735 = vunpack.c.l.b16 %v726
    %v736 = vunpack.c.l.b16 %v727
    %v737 = vunpack.c.l.b16 %v728
    %v738 = vpack.c.b16 %v735, %v734
    %v739 = vpack.c.b16 %v737, %v736
    %v741 = vsel %vm591, %v738, 0
    %v744 = vsel %vm591, %v739, 0
    %v747 = vsel %vm598, %v729, 0
    %749 = vmatprep.subr.bf16.mxu0 0
    %750 = vmatpush1.bf16.msra.mxu0 0
    %751 = vmatprep.subr.bf16.mxu0 0
    %752 = vmatpush1.bf16.msra.mxu0 0
    %753 = vmatprep.subr.bf16.mxu0 0
    %754 = vmatpush1.bf16.msra.mxu0 0
    %755 = vmatprep.subr.bf16.mxu0 0
    %756 = vmatpush1.bf16.msra.mxu0 0
    %757 = vmatprep.subr.bf16.mxu0 0
    %758 = vmatpush1.bf16.msra.mxu0 0
    %759 = vmatprep.subr.bf16.mxu0 0
    %760 = vmatpush1.bf16.msra.mxu0 0
    %761 = vmatprep.subr.bf16.mxu0 0
    %762 = vmatpush1.bf16.msra.mxu0 0
    %763 = vmatprep.subr.bf16.mxu0 0
    %764 = vmatpush1.bf16.msra.mxu0 %v747
    %765 = vmatprep.subr.bf16.mxu0 0
    %766 = vmatpush2.bf16.msra.mxu0 0
    %767 = vmatprep.subr.bf16.mxu0 0
    %768 = vmatpush2.bf16.msra.mxu0 0
    %769 = vmatprep.subr.bf16.mxu0 0
    %770 = vmatpush2.bf16.msra.mxu0 0
    %771 = vmatprep.subr.bf16.mxu0 0
    %772 = vmatpush2.bf16.msra.mxu0 0
    %773 = vmatprep.subr.bf16.mxu0 0
    %774 = vmatpush2.bf16.msra.mxu0 0
    %775 = vmatprep.subr.bf16.mxu0 0
    %776 = vmatpush2.bf16.msra.mxu0 0
    %777 = vmatprep.subr.bf16.mxu0 0
    %778 = vmatpush2.bf16.msra.mxu0 0
    %779 = vmatprep.subr.bf16.mxu0 0
    %780 = vmatpush2.bf16.msra.mxu0 0
    %781 = vmatprep.mubr.bf16.mxu0 0
    %782 = vmatmul.mubr.bf16.gmra.mxu0 %v741
    %v783 = vpop.f32.mrf.mxu0
    %v784 = vadd.f32 %v466, %v783
    %v785 = vpop.f32.mrf.mxu0
    %v786 = vpop.f32.mrf.mxu0
    %v787 = vadd.f32 %v467, %v786
    %v788 = vpop.f32.mrf.mxu0
    %789 = vmatprep.mubr.bf16.mxu0 0
    %790 = vmatmul.mubr.bf16.gmra.mxu0 %v744
    %v791 = vpop.f32.mrf.mxu0
    %v792 = vadd.f32 %v468, %v791
    %v793 = vpop.f32.mrf.mxu0
    %v794 = vpop.f32.mrf.mxu0
    %v795 = vadd.f32 %v469, %v794
    %v796 = vpop.f32.mrf.mxu0
    %797 = vdwg.mxu0
    %v798 = vtanh.pop %v784
    %v799 = vtanh.pop %v787
    %v800 = vtanh.pop %v792
    %v801 = vtanh.pop %v795
    %v802 = vld [vmem:[%s3 + $0x8] sm:$0xf]
    %v803 = vld [vmem:[%s3 + $0xc] sm:$0xf]
    %v804 = vld [vmem:[%s4 + $0x110] sm:$0xff]
    %v805 = vld [vmem:[%s4 + $0x118] sm:$0xff]
    %v806 = vpack.c.bf16 %v799, %v798
    %v807 = vpack.c.bf16 %v801, %v800
    %809 = vset.pattern.permute.xlu0 0
    %810 = vperm.xlu0 %809, %v804
    %v811 = vpop.permute.xlu0 %810
    %814 = vset.pattern.permute.xlu0 0
    %815 = vperm.xlu0 %814, %v805
    %v816 = vpop.permute.xlu0 %815
    %v820 = vunpack.c.l.b16 %v802
    %v821 = vunpack.c.l.b16 %v803
    %v822 = vpack.c.b16 %v821, %v820
    %v824 = vsel %vm140, %v822, 0
    %826 = vmatprep.subr.bf16.mxu0 0
    %827 = vmatpush1.bf16.msra.mxu0 0
    %828 = vmatprep.subr.bf16.mxu0 0
    %829 = vmatpush1.bf16.msra.mxu0 0
    %830 = vmatprep.subr.bf16.mxu0 0
    %831 = vmatpush1.bf16.msra.mxu0 0
    %832 = vmatprep.subr.bf16.mxu0 0
    %833 = vmatpush1.bf16.msra.mxu0 0
    %834 = vmatprep.subr.bf16.mxu0 0
    %835 = vmatpush1.bf16.msra.mxu0 0
    %836 = vmatprep.subr.bf16.mxu0 0
    %837 = vmatpush1.bf16.msra.mxu0 0
    %838 = vmatprep.subr.bf16.mxu0 0
    %839 = vmatpush1.bf16.msra.mxu0 %v807
    %840 = vmatprep.subr.bf16.mxu0 0
    %841 = vmatpush1.bf16.msra.mxu0 %v806
    %842 = vmatprep.subr.bf16.mxu0 0
    %843 = vmatpush2.bf16.msra.mxu0 0
    %844 = vmatprep.subr.bf16.mxu0 0
    %845 = vmatpush2.bf16.msra.mxu0 0
    %846 = vmatprep.subr.bf16.mxu0 0
    %847 = vmatpush2.bf16.msra.mxu0 0
    %848 = vmatprep.subr.bf16.mxu0 0
    %849 = vmatpush2.bf16.msra.mxu0 0
    %850 = vmatprep.subr.bf16.mxu0 0
    %851 = vmatpush2.bf16.msra.mxu0 0
    %852 = vmatprep.subr.bf16.mxu0 0
    %853 = vmatpush2.bf16.msra.mxu0 0
    %854 = vmatprep.subr.bf16.mxu0 0
    %855 = vmatpush2.bf16.msra.mxu0 0
    %856 = vmatprep.subr.bf16.mxu0 0
    %857 = vmatpush2.bf16.msra.mxu0 0
    %858 = vmatprep.mubr.bf16.mxu0 0
    %859 = vmatmul.mubr.bf16.gmra.mxu0 %v824
    %v860 = vpop.f32.mrf.mxu0
    %v861 = vadd.f32 %v811, %v860
    %v862 = vpop.f32.mrf.mxu0
    %v863 = vpop.f32.mrf.mxu0
    %v864 = vadd.f32 %v816, %v863
    %v865 = vpop.f32.mrf.mxu0
    %866 = vdwg.mxu0
    %v867 = vtanh.pop %v861
    %v868 = vmul.f32 %v867, 1.442695
    %v869 = vpow.pop %v868
    %v870 = vmul.f32 %v574, %v869
    %v871 = vadd.f32 %v870, %v864
    %v872 = vld [vmem:[%s2 + $0x20] sm:$0xf]
    %v873 = vld [vmem:[%s2 + $0x24] sm:$0xf]
    %v874 = vld [vmem:[%s2 + $0x28] sm:$0xf]
    %v875 = vld [vmem:[%s2 + $0x2c] sm:$0xf]
    %v876 = vpack.c.bf16 %v871, %v871
    %v881 = vunpack.c.l.b16 %v872
    %v882 = vunpack.c.l.b16 %v873
    %v883 = vunpack.c.l.b16 %v874
    %v884 = vunpack.c.l.b16 %v875
    %v885 = vpack.c.b16 %v882, %v881
    %v886 = vpack.c.b16 %v884, %v883
    %v888 = vsel %vm591, %v885, 0
    %v891 = vsel %vm591, %v886, 0
    %v894 = vsel %vm598, %v876, 0
    %896 = vmatprep.subr.bf16.mxu0 0
    %897 = vmatpush1.bf16.msra.mxu0 0
    %898 = vmatprep.subr.bf16.mxu0 0
    %899 = vmatpush1.bf16.msra.mxu0 0
    %900 = vmatprep.subr.bf16.mxu0 0
    %901 = vmatpush1.bf16.msra.mxu0 0
    %902 = vmatprep.subr.bf16.mxu0 0
    %903 = vmatpush1.bf16.msra.mxu0 0
    %904 = vmatprep.subr.bf16.mxu0 0
    %905 = vmatpush1.bf16.msra.mxu0 0
    %906 = vmatprep.subr.bf16.mxu0 0
    %907 = vmatpush1.bf16.msra.mxu0 0
    %908 = vmatprep.subr.bf16.mxu0 0
    %909 = vmatpush1.bf16.msra.mxu0 0
    %910 = vmatprep.subr.bf16.mxu0 0
    %911 = vmatpush1.bf16.msra.mxu0 %v894
    %912 = vmatprep.subr.bf16.mxu0 0
    %913 = vmatpush2.bf16.msra.mxu0 0
    %914 = vmatprep.subr.bf16.mxu0 0
    %915 = vmatpush2.bf16.msra.mxu0 0
    %916 = vmatprep.subr.bf16.mxu0 0
    %917 = vmatpush2.bf16.msra.mxu0 0
    %918 = vmatprep.subr.bf16.mxu0 0
    %919 = vmatpush2.bf16.msra.mxu0 0
    %920 = vmatprep.subr.bf16.mxu0 0
    %921 = vmatpush2.bf16.msra.mxu0 0
    %922 = vmatprep.subr.bf16.mxu0 0
    %923 = vmatpush2.bf16.msra.mxu0 0
    %924 = vmatprep.subr.bf16.mxu0 0
    %925 = vmatpush2.bf16.msra.mxu0 0
    %926 = vmatprep.subr.bf16.mxu0 0
    %927 = vmatpush2.bf16.msra.mxu0 0
    %928 = vmatprep.mubr.bf16.mxu0 0
    %929 = vmatmul.mubr.bf16.gmra.mxu0 %v888
    %v930 = vpop.f32.mrf.mxu0
    %v931 = vadd.f32 %v470, %v930
    %v932 = vpop.f32.mrf.mxu0
    %v933 = vpop.f32.mrf.mxu0
    %v934 = vadd.f32 %v471, %v933
    %v935 = vpop.f32.mrf.mxu0
    %936 = vmatprep.mubr.bf16.mxu0 0
    %937 = vmatmul.mubr.bf16.gmra.mxu0 %v891
    %v938 = vpop.f32.mrf.mxu0
    %v939 = vadd.f32 %v472, %v938
    %v940 = vpop.f32.mrf.mxu0
    %v941 = vpop.f32.mrf.mxu0
    %v942 = vadd.f32 %v473, %v941
    %v943 = vpop.f32.mrf.mxu0
    %944 = vdwg.mxu0
    %v945 = vtanh.pop %v931
    %v946 = vtanh.pop %v934
    %v947 = vtanh.pop %v939
    %v948 = vtanh.pop %v942
    %v949 = vld [vmem:[%s3 + $0x10] sm:$0xf]
    %v950 = vld [vmem:[%s3 + $0x14] sm:$0xf]
    %v951 = vld [vmem:[%s4 + $0x120] sm:$0xff]
    %v952 = vld [vmem:[%s4 + $0x128] sm:$0xff]
    %v953 = vpack.c.bf16 %v946, %v945
    %v954 = vpack.c.bf16 %v948, %v947
    %956 = vset.pattern.permute.xlu0 0
    %957 = vperm.xlu0 %956, %v951
    %v958 = vpop.permute.xlu0 %957
    %961 = vset.pattern.permute.xlu0 0
    %962 = vperm.xlu0 %961, %v952
    %v963 = vpop.permute.xlu0 %962
    %v967 = vunpack.c.l.b16 %v949
    %v968 = vunpack.c.l.b16 %v950
    %v969 = vpack.c.b16 %v968, %v967
    %v971 = vsel %vm140, %v969, 0
    %973 = vmatprep.subr.bf16.mxu0 0
    %974 = vmatpush1.bf16.msra.mxu0 0
    %975 = vmatprep.subr.bf16.mxu0 0
    %976 = vmatpush1.bf16.msra.mxu0 0
    %977 = vmatprep.subr.bf16.mxu0 0
    %978 = vmatpush1.bf16.msra.mxu0 0
    %979 = vmatprep.subr.bf16.mxu0 0
    %980 = vmatpush1.bf16.msra.mxu0 0
    %981 = vmatprep.subr.bf16.mxu0 0
    %982 = vmatpush1.bf16.msra.mxu0 0
    %983 = vmatprep.subr.bf16.mxu0 0
    %984 = vmatpush1.bf16.msra.mxu0 0
    %985 = vmatprep.subr.bf16.mxu0 0
    %986 = vmatpush1.bf16.msra.mxu0 %v954
    %987 = vmatprep.subr.bf16.mxu0 0
    %988 = vmatpush1.bf16.msra.mxu0 %v953
    %989 = vmatprep.subr.bf16.mxu0 0
    %990 = vmatpush2.bf16.msra.mxu0 0
    %991 = vmatprep.subr.bf16.mxu0 0
    %992 = vmatpush2.bf16.msra.mxu0 0
    %993 = vmatprep.subr.bf16.mxu0 0
    %994 = vmatpush2.bf16.msra.mxu0 0
    %995 = vmatprep.subr.bf16.mxu0 0
    %996 = vmatpush2.bf16.msra.mxu0 0
    %997 = vmatprep.subr.bf16.mxu0 0
    %998 = vmatpush2.bf16.msra.mxu0 0
    %999 = vmatprep.subr.bf16.mxu0 0
    %1000 = vmatpush2.bf16.msra.mxu0 0
    %1001 = vmatprep.subr.bf16.mxu0 0
    %1002 = vmatpush2.bf16.msra.mxu0 0
    %1003 = vmatprep.subr.bf16.mxu0 0
    %1004 = vmatpush2.bf16.msra.mxu0 0
    %1005 = vmatprep.mubr.bf16.mxu0 0
    %1006 = vmatmul.mubr.bf16.gmra.mxu0 %v971
    %v1007 = vpop.f32.mrf.mxu0
    %v1008 = vadd.f32 %v958, %v1007
    %v1009 = vpop.f32.mrf.mxu0
    %v1010 = vpop.f32.mrf.mxu0
    %v1011 = vadd.f32 %v963, %v1010
    %v1012 = vpop.f32.mrf.mxu0
    %1013 = vdwg.mxu0
    %v1014 = vtanh.pop %v1008
    %v1015 = vmul.f32 %v1014, 1.442695
    %v1016 = vpow.pop %v1015
    %v1017 = vmul.f32 %v724, %v1016
    %v1018 = vadd.f32 %v1017, %v1011
    %v1019 = vld [vmem:[%s2 + $0x30] sm:$0xf]
    %v1020 = vld [vmem:[%s2 + $0x34] sm:$0xf]
    %v1021 = vld [vmem:[%s2 + $0x38] sm:$0xf]
    %v1022 = vld [vmem:[%s2 + $0x3c] sm:$0xf]
    %v1023 = vpack.c.bf16 %v1018, %v1018
    %v1028 = vunpack.c.l.b16 %v1019
    %v1029 = vunpack.c.l.b16 %v1020
    %v1030 = vunpack.c.l.b16 %v1021
    %v1031 = vunpack.c.l.b16 %v1022
    %v1032 = vpack.c.b16 %v1029, %v1028
    %v1033 = vpack.c.b16 %v1031, %v1030
    %v1035 = vsel %vm591, %v1032, 0
    %v1038 = vsel %vm591, %v1033, 0
    %v1041 = vsel %vm598, %v1023, 0
    %1043 = vmatprep.subr.bf16.mxu0 0
    %1044 = vmatpush1.bf16.msra.mxu0 0
    %1045 = vmatprep.subr.bf16.mxu0 0
    %1046 = vmatpush1.bf16.msra.mxu0 0
    %1047 = vmatprep.subr.bf16.mxu0 0
    %1048 = vmatpush1.bf16.msra.mxu0 0
    %1049 = vmatprep.subr.bf16.mxu0 0
    %1050 = vmatpush1.bf16.msra.mxu0 0
    %1051 = vmatprep.subr.bf16.mxu0 0
    %1052 = vmatpush1.bf16.msra.mxu0 0
    %1053 = vmatprep.subr.bf16.mxu0 0
    %1054 = vmatpush1.bf16.msra.mxu0 0
    %1055 = vmatprep.subr.bf16.mxu0 0
    %1056 = vmatpush1.bf16.msra.mxu0 0
    %1057 = vmatprep.subr.bf16.mxu0 0
    %1058 = vmatpush1.bf16.msra.mxu0 %v1041
    %1059 = vmatprep.subr.bf16.mxu0 0
    %1060 = vmatpush2.bf16.msra.mxu0 0
    %1061 = vmatprep.subr.bf16.mxu0 0
    %1062 = vmatpush2.bf16.msra.mxu0 0
    %1063 = vmatprep.subr.bf16.mxu0 0
    %1064 = vmatpush2.bf16.msra.mxu0 0
    %1065 = vmatprep.subr.bf16.mxu0 0
    %1066 = vmatpush2.bf16.msra.mxu0 0
    %1067 = vmatprep.subr.bf16.mxu0 0
    %1068 = vmatpush2.bf16.msra.mxu0 0
    %1069 = vmatprep.subr.bf16.mxu0 0
    %1070 = vmatpush2.bf16.msra.mxu0 0
    %1071 = vmatprep.subr.bf16.mxu0 0
    %1072 = vmatpush2.bf16.msra.mxu0 0
    %1073 = vmatprep.subr.bf16.mxu0 0
    %1074 = vmatpush2.bf16.msra.mxu0 0
    %1075 = vmatprep.mubr.bf16.mxu0 0
    %1076 = vmatmul.mubr.bf16.gmra.mxu0 %v1035
    %v1077 = vpop.f32.mrf.mxu0
    %v1078 = vadd.f32 %v474, %v1077
    %v1079 = vpop.f32.mrf.mxu0
    %v1080 = vpop.f32.mrf.mxu0
    %v1081 = vadd.f32 %v475, %v1080
    %v1082 = vpop.f32.mrf.mxu0
    %1083 = vmatprep.mubr.bf16.mxu0 0
    %1084 = vmatmul.mubr.bf16.gmra.mxu0 %v1038
    %v1085 = vpop.f32.mrf.mxu0
    %v1086 = vadd.f32 %v476, %v1085
    %v1087 = vpop.f32.mrf.mxu0
    %v1088 = vpop.f32.mrf.mxu0
    %v1089 = vadd.f32 %v477, %v1088
    %v1090 = vpop.f32.mrf.mxu0
    %1091 = vdwg.mxu0
    %v1092 = vtanh.pop %v1078
    %v1093 = vtanh.pop %v1081
    %v1094 = vtanh.pop %v1086
    %v1095 = vtanh.pop %v1089
    %v1096 = vld [vmem:[%s3 + $0x18] sm:$0xf]
    %v1097 = vld [vmem:[%s3 + $0x1c] sm:$0xf]
    %v1098 = vld [vmem:[%s4 + $0x130] sm:$0xff]
    %v1099 = vld [vmem:[%s4 + $0x138] sm:$0xff]
    %v1100 = vpack.c.bf16 %v1093, %v1092
    %v1101 = vpack.c.bf16 %v1095, %v1094
    %1103 = vset.pattern.permute.xlu0 0
    %1104 = vperm.xlu0 %1103, %v1098
    %v1105 = vpop.permute.xlu0 %1104
    %1108 = vset.pattern.permute.xlu0 0
    %1109 = vperm.xlu0 %1108, %v1099
    %v1110 = vpop.permute.xlu0 %1109
    %v1114 = vunpack.c.l.b16 %v1096
    %v1115 = vunpack.c.l.b16 %v1097
    %v1116 = vpack.c.b16 %v1115, %v1114
    %v1118 = vsel %vm140, %v1116, 0
    %1120 = vmatprep.subr.bf16.mxu0 0
    %1121 = vmatpush1.bf16.msra.mxu0 0
    %1122 = vmatprep.subr.bf16.mxu0 0
    %1123 = vmatpush1.bf16.msra.mxu0 0
    %1124 = vmatprep.subr.bf16.mxu0 0
    %1125 = vmatpush1.bf16.msra.mxu0 0
    %1126 = vmatprep.subr.bf16.mxu0 0
    %1127 = vmatpush1.bf16.msra.mxu0 0
    %1128 = vmatprep.subr.bf16.mxu0 0
    %1129 = vmatpush1.bf16.msra.mxu0 0
    %1130 = vmatprep.subr.bf16.mxu0 0
    %1131 = vmatpush1.bf16.msra.mxu0 0
    %1132 = vmatprep.subr.bf16.mxu0 0
    %1133 = vmatpush1.bf16.msra.mxu0 %v1101
    %1134 = vmatprep.subr.bf16.mxu0 0
    %1135 = vmatpush1.bf16.msra.mxu0 %v1100
    %1136 = vmatprep.subr.bf16.mxu0 0
    %1137 = vmatpush2.bf16.msra.mxu0 0
    %1138 = vmatprep.subr.bf16.mxu0 0
    %1139 = vmatpush2.bf16.msra.mxu0 0
    %1140 = vmatprep.subr.bf16.mxu0 0
    %1141 = vmatpush2.bf16.msra.mxu0 0
    %1142 = vmatprep.subr.bf16.mxu0 0
    %1143 = vmatpush2.bf16.msra.mxu0 0
    %1144 = vmatprep.subr.bf16.mxu0 0
    %1145 = vmatpush2.bf16.msra.mxu0 0
    %1146 = vmatprep.subr.bf16.mxu0 0
    %1147 = vmatpush2.bf16.msra.mxu0 0
    %1148 = vmatprep.subr.bf16.mxu0 0
    %1149 = vmatpush2.bf16.msra.mxu0 0
    %1150 = vmatprep.subr.bf16.mxu0 0
    %1151 = vmatpush2.bf16.msra.mxu0 0
    %1152 = vmatprep.mubr.bf16.mxu0 0
    %1153 = vmatmul.mubr.bf16.gmra.mxu0 %v1118
    %v1154 = vpop.f32.mrf.mxu0
    %v1155 = vadd.f32 %v1105, %v1154
    %v1156 = vpop.f32.mrf.mxu0
    %v1157 = vpop.f32.mrf.mxu0
    %v1158 = vadd.f32 %v1110, %v1157
    %v1159 = vpop.f32.mrf.mxu0
    %1160 = vdwg.mxu0
    %v1161 = vtanh.pop %v1155
    %v1162 = vmul.f32 %v1161, 1.442695
    %v1163 = vpow.pop %v1162
    %v1164 = vmul.f32 %v871, %v1163
    %v1165 = vadd.f32 %v1164, %v1158
    %1166 = vmatprep.subr.bf16.mxu0 0
    %1167 = vmatpush1.bf16.msra.mxu0 0
    %1168 = vmatprep.subr.bf16.mxu0 0
    %1169 = vmatpush1.bf16.msra.mxu0 0
    %1170 = vmatprep.subr.bf16.mxu0 0
    %1171 = vmatpush1.bf16.msra.mxu0 0
    %1172 = vmatprep.subr.bf16.mxu0 0
    %1173 = vmatpush1.bf16.msra.mxu0 0
    %1174 = vmatprep.subr.bf16.mxu0 0
    %1175 = vmatpush1.bf16.msra.mxu0 0
    %1176 = vmatprep.subr.bf16.mxu0 0
    %1177 = vmatpush1.bf16.msra.mxu0 0
    %1178 = vmatprep.subr.bf16.mxu0 0
    %1179 = vmatpush1.bf16.msra.mxu0 0
    %1180 = vmatprep.subr.bf16.mxu0 0
    %1181 = vmatpush1.bf16.msra.mxu0 %v1041
    %1182 = vmatprep.subr.bf16.mxu0 0
    %1183 = vmatpush2.bf16.msra.mxu0 0
    %1184 = vmatprep.subr.bf16.mxu0 0
    %1185 = vmatpush2.bf16.msra.mxu0 0
    %1186 = vmatprep.subr.bf16.mxu0 0
    %1187 = vmatpush2.bf16.msra.mxu0 0
    %1188 = vmatprep.subr.bf16.mxu0 0
    %1189 = vmatpush2.bf16.msra.mxu0 0
    %1190 = vmatprep.subr.bf16.mxu0 0
    %1191 = vmatpush2.bf16.msra.mxu0 0
    %1192 = vmatprep.subr.bf16.mxu0 0
    %1193 = vmatpush2.bf16.msra.mxu0 0
    %1194 = vmatprep.subr.bf16.mxu0 0
    %1195 = vmatpush2.bf16.msra.mxu0 0
    %1196 = vmatprep.subr.bf16.mxu0 0
    %1197 = vmatpush2.bf16.msra.mxu0 0
    %1198 = vmatprep.mubr.bf16.mxu0 0
    %1199 = vmatmul.mubr.bf16.gmra.mxu0 %v1035
    %v1200 = vpop.f32.mrf.mxu0
    %v1201 = vadd.f32 %v570, %v1200
    %v1202 = vpop.f32.mrf.mxu0
    %v1203 = vpop.f32.mrf.mxu0
    %v1204 = vadd.f32 %v571, %v1203
    %v1205 = vpop.f32.mrf.mxu0
    %1206 = vmatprep.mubr.bf16.mxu0 0
    %1207 = vmatmul.mubr.bf16.gmra.mxu0 %v1038
    %v1208 = vpop.f32.mrf.mxu0
    %v1209 = vadd.f32 %v572, %v1208
    %v1210 = vpop.f32.mrf.mxu0
    %v1211 = vpop.f32.mrf.mxu0
    %v1212 = vadd.f32 %v573, %v1211
    %v1213 = vpop.f32.mrf.mxu0
    %1214 = vdwg.mxu0
    %v1215 = vtanh.pop %v1201
    %v1216 = vtanh.pop %v1204
    %v1217 = vtanh.pop %v1209
    %v1218 = vtanh.pop %v1212
    %v1219 = vpack.c.bf16 %v1216, %v1215
    %v1220 = vpack.c.bf16 %v1218, %v1217
    %1221 = vmatprep.subr.bf16.mxu0 0
    %1222 = vmatpush1.bf16.msra.mxu0 0
    %1223 = vmatprep.subr.bf16.mxu0 0
    %1224 = vmatpush1.bf16.msra.mxu0 0
    %1225 = vmatprep.subr.bf16.mxu0 0
    %1226 = vmatpush1.bf16.msra.mxu0 0
    %1227 = vmatprep.subr.bf16.mxu0 0
    %1228 = vmatpush1.bf16.msra.mxu0 0
    %1229 = vmatprep.subr.bf16.mxu0 0
    %1230 = vmatpush1.bf16.msra.mxu0 0
    %1231 = vmatprep.subr.bf16.mxu0 0
    %1232 = vmatpush1.bf16.msra.mxu0 0
    %1233 = vmatprep.subr.bf16.mxu0 0
    %1234 = vmatpush1.bf16.msra.mxu0 %v1220
    %1235 = vmatprep.subr.bf16.mxu0 0
    %1236 = vmatpush1.bf16.msra.mxu0 %v1219
    %1237 = vmatprep.subr.bf16.mxu0 0
    %1238 = vmatpush2.bf16.msra.mxu0 0
    %1239 = vmatprep.subr.bf16.mxu0 0
    %1240 = vmatpush2.bf16.msra.mxu0 0
    %1241 = vmatprep.subr.bf16.mxu0 0
    %1242 = vmatpush2.bf16.msra.mxu0 0
    %1243 = vmatprep.subr.bf16.mxu0 0
    %1244 = vmatpush2.bf16.msra.mxu0 0
    %1245 = vmatprep.subr.bf16.mxu0 0
    %1246 = vmatpush2.bf16.msra.mxu0 0
    %1247 = vmatprep.subr.bf16.mxu0 0
    %1248 = vmatpush2.bf16.msra.mxu0 0
    %1249 = vmatprep.subr.bf16.mxu0 0
    %1250 = vmatpush2.bf16.msra.mxu0 0
    %1251 = vmatprep.subr.bf16.mxu0 0
    %1252 = vmatpush2.bf16.msra.mxu0 0
    %1253 = vmatprep.mubr.bf16.mxu0 0
    %1254 = vmatmul.mubr.bf16.gmra.mxu0 %v1118
    %v1255 = vpop.f32.mrf.mxu0
    %v1256 = vadd.f32 %v1105, %v1255
    %v1257 = vpop.f32.mrf.mxu0
    %v1258 = vpop.f32.mrf.mxu0
    %v1259 = vadd.f32 %v1110, %v1258
    %v1260 = vpop.f32.mrf.mxu0
    %1261 = vdwg.mxu0
    %v1262 = vtanh.pop %v1256
    %v1263 = vsub.f32 %v1165, %v1259
    %v1264 = vsub.f32 0.0, %v1262
    %v1265 = vmul.f32 %v1264, 1.442695
    %v1266 = vpow.pop %v1265
    %v1267 = vmul.f32 %v1263, %v1266
    %v1268 = vpack.c.bf16 %v1267, %v1267
    %v1270 = vsel %vm598, %v1268, 0
    %1272 = vmatprep.subr.bf16.mxu0 0
    %1273 = vmatpush1.bf16.msra.mxu0 0
    %1274 = vmatprep.subr.bf16.mxu0 0
    %1275 = vmatpush1.bf16.msra.mxu0 0
    %1276 = vmatprep.subr.bf16.mxu0 0
    %1277 = vmatpush1.bf16.msra.mxu0 0
    %1278 = vmatprep.subr.bf16.mxu0 0
    %1279 = vmatpush1.bf16.msra.mxu0 0
    %1280 = vmatprep.subr.bf16.mxu0 0
    %1281 = vmatpush1.bf16.msra.mxu0 0
    %1282 = vmatprep.subr.bf16.mxu0 0
    %1283 = vmatpush1.bf16.msra.mxu0 0
    %1284 = vmatprep.subr.bf16.mxu0 0
    %1285 = vmatpush1.bf16.msra.mxu0 0
    %1286 = vmatprep.subr.bf16.mxu0 0
    %1287 = vmatpush1.bf16.msra.mxu0 %v1270
    %1288 = vmatprep.subr.bf16.mxu0 0
    %1289 = vmatpush2.bf16.msra.mxu0 0
    %1290 = vmatprep.subr.bf16.mxu0 0
    %1291 = vmatpush2.bf16.msra.mxu0 0
    %1292 = vmatprep.subr.bf16.mxu0 0
    %1293 = vmatpush2.bf16.msra.mxu0 0
    %1294 = vmatprep.subr.bf16.mxu0 0
    %1295 = vmatpush2.bf16.msra.mxu0 0
    %1296 = vmatprep.subr.bf16.mxu0 0
    %1297 = vmatpush2.bf16.msra.mxu0 0
    %1298 = vmatprep.subr.bf16.mxu0 0
    %1299 = vmatpush2.bf16.msra.mxu0 0
    %1300 = vmatprep.subr.bf16.mxu0 0
    %1301 = vmatpush2.bf16.msra.mxu0 0
    %1302 = vmatprep.subr.bf16.mxu0 0
    %1303 = vmatpush2.bf16.msra.mxu0 0
    %1304 = vmatprep.mubr.bf16.mxu0 0
    %1305 = vmatmul.mubr.bf16.gmra.mxu0 %v888
    %v1306 = vpop.f32.mrf.mxu0
    %v1307 = vadd.f32 %v566, %v1306
    %v1308 = vpop.f32.mrf.mxu0
    %v1309 = vpop.f32.mrf.mxu0
    %v1310 = vadd.f32 %v567, %v1309
    %v1311 = vpop.f32.mrf.mxu0
    %1312 = vmatprep.mubr.bf16.mxu0 0
    %1313 = vmatmul.mubr.bf16.gmra.mxu0 %v891
    %v1314 = vpop.f32.mrf.mxu0
    %v1315 = vadd.f32 %v568, %v1314
    %v1316 = vpop.f32.mrf.mxu0
    %v1317 = vpop.f32.mrf.mxu0
    %v1318 = vadd.f32 %v569, %v1317
    %v1319 = vpop.f32.mrf.mxu0
    %1320 = vdwg.mxu0
    %v1321 = vtanh.pop %v1307
    %v1322 = vtanh.pop %v1310
    %v1323 = vtanh.pop %v1315
    %v1324 = vtanh.pop %v1318
    %v1325 = vpack.c.bf16 %v1322, %v1321
    %v1326 = vpack.c.bf16 %v1324, %v1323
    %1327 = vmatprep.subr.bf16.mxu0 0
    %1328 = vmatpush1.bf16.msra.mxu0 0
    %1329 = vmatprep.subr.bf16.mxu0 0
    %1330 = vmatpush1.bf16.msra.mxu0 0
    %1331 = vmatprep.subr.bf16.mxu0 0
    %1332 = vmatpush1.bf16.msra.mxu0 0
    %1333 = vmatprep.subr.bf16.mxu0 0
    %1334 = vmatpush1.bf16.msra.mxu0 0
    %1335 = vmatprep.subr.bf16.mxu0 0
    %1336 = vmatpush1.bf16.msra.mxu0 0
    %1337 = vmatprep.subr.bf16.mxu0 0
    %1338 = vmatpush1.bf16.msra.mxu0 0
    %1339 = vmatprep.subr.bf16.mxu0 0
    %1340 = vmatpush1.bf16.msra.mxu0 %v1326
    %1341 = vmatprep.subr.bf16.mxu0 0
    %1342 = vmatpush1.bf16.msra.mxu0 %v1325
    %1343 = vmatprep.subr.bf16.mxu0 0
    %1344 = vmatpush2.bf16.msra.mxu0 0
    %1345 = vmatprep.subr.bf16.mxu0 0
    %1346 = vmatpush2.bf16.msra.mxu0 0
    %1347 = vmatprep.subr.bf16.mxu0 0
    %1348 = vmatpush2.bf16.msra.mxu0 0
    %1349 = vmatprep.subr.bf16.mxu0 0
    %1350 = vmatpush2.bf16.msra.mxu0 0
    %1351 = vmatprep.subr.bf16.mxu0 0
    %1352 = vmatpush2.bf16.msra.mxu0 0
    %1353 = vmatprep.subr.bf16.mxu0 0
    %1354 = vmatpush2.bf16.msra.mxu0 0
    %1355 = vmatprep.subr.bf16.mxu0 0
    %1356 = vmatpush2.bf16.msra.mxu0 0
    %1357 = vmatprep.subr.bf16.mxu0 0
    %1358 = vmatpush2.bf16.msra.mxu0 0
    %1359 = vmatprep.mubr.bf16.mxu0 0
    %1360 = vmatmul.mubr.bf16.gmra.mxu0 %v971
    %v1361 = vpop.f32.mrf.mxu0
    %v1362 = vadd.f32 %v958, %v1361
    %v1363 = vpop.f32.mrf.mxu0
    %v1364 = vpop.f32.mrf.mxu0
    %v1365 = vadd.f32 %v963, %v1364
    %v1366 = vpop.f32.mrf.mxu0
    %1367 = vdwg.mxu0
    %v1368 = vtanh.pop %v1362
    %v1369 = vsub.f32 %v1018, %v1365
    %v1370 = vsub.f32 0.0, %v1368
    %v1371 = vmul.f32 %v1370, 1.442695
    %v1372 = vpow.pop %v1371
    %v1373 = vmul.f32 %v1369, %v1372
    %v1374 = vpack.c.bf16 %v1373, %v1373
    %v1376 = vsel %vm598, %v1374, 0
    %1378 = vmatprep.subr.bf16.mxu0 0
    %1379 = vmatpush1.bf16.msra.mxu0 0
    %1380 = vmatprep.subr.bf16.mxu0 0
    %1381 = vmatpush1.bf16.msra.mxu0 0
    %1382 = vmatprep.subr.bf16.mxu0 0
    %1383 = vmatpush1.bf16.msra.mxu0 0
    %1384 = vmatprep.subr.bf16.mxu0 0
    %1385 = vmatpush1.bf16.msra.mxu0 0
    %1386 = vmatprep.subr.bf16.mxu0 0
    %1387 = vmatpush1.bf16.msra.mxu0 0
    %1388 = vmatprep.subr.bf16.mxu0 0
    %1389 = vmatpush1.bf16.msra.mxu0 0
    %1390 = vmatprep.subr.bf16.mxu0 0
    %1391 = vmatpush1.bf16.msra.mxu0 0
    %1392 = vmatprep.subr.bf16.mxu0 0
    %1393 = vmatpush1.bf16.msra.mxu0 %v1376
    %1394 = vmatprep.subr.bf16.mxu0 0
    %1395 = vmatpush2.bf16.msra.mxu0 0
    %1396 = vmatprep.subr.bf16.mxu0 0
    %1397 = vmatpush2.bf16.msra.mxu0 0
    %1398 = vmatprep.subr.bf16.mxu0 0
    %1399 = vmatpush2.bf16.msra.mxu0 0
    %1400 = vmatprep.subr.bf16.mxu0 0
    %1401 = vmatpush2.bf16.msra.mxu0 0
    %1402 = vmatprep.subr.bf16.mxu0 0
    %1403 = vmatpush2.bf16.msra.mxu0 0
    %1404 = vmatprep.subr.bf16.mxu0 0
    %1405 = vmatpush2.bf16.msra.mxu0 0
    %1406 = vmatprep.subr.bf16.mxu0 0
    %1407 = vmatpush2.bf16.msra.mxu0 0
    %1408 = vmatprep.subr.bf16.mxu0 0
    %1409 = vmatpush2.bf16.msra.mxu0 0
    %1410 = vmatprep.mubr.bf16.mxu0 0
    %1411 = vmatmul.mubr.bf16.gmra.mxu0 %v741
    %v1412 = vpop.f32.mrf.mxu0
    %v1413 = vadd.f32 %v562, %v1412
    %v1414 = vpop.f32.mrf.mxu0
    %v1415 = vpop.f32.mrf.mxu0
    %v1416 = vadd.f32 %v563, %v1415
    %v1417 = vpop.f32.mrf.mxu0
    %1418 = vmatprep.mubr.bf16.mxu0 0
    %1419 = vmatmul.mubr.bf16.gmra.mxu0 %v744
    %v1420 = vpop.f32.mrf.mxu0
    %v1421 = vadd.f32 %v564, %v1420
    %v1422 = vpop.f32.mrf.mxu0
    %v1423 = vpop.f32.mrf.mxu0
    %v1424 = vadd.f32 %v565, %v1423
    %v1425 = vpop.f32.mrf.mxu0
    %1426 = vdwg.mxu0
    %v1427 = vtanh.pop %v1413
    %v1428 = vtanh.pop %v1416
    %v1429 = vtanh.pop %v1421
    %v1430 = vtanh.pop %v1424
    %v1431 = vpack.c.bf16 %v1428, %v1427
    %v1432 = vpack.c.bf16 %v1430, %v1429
    %1433 = vmatprep.subr.bf16.mxu0 0
    %1434 = vmatpush1.bf16.msra.mxu0 0
    %1435 = vmatprep.subr.bf16.mxu0 0
    %1436 = vmatpush1.bf16.msra.mxu0 0
    %1437 = vmatprep.subr.bf16.mxu0 0
    %1438 = vmatpush1.bf16.msra.mxu0 0
    %1439 = vmatprep.subr.bf16.mxu0 0
    %1440 = vmatpush1.bf16.msra.mxu0 0
    %1441 = vmatprep.subr.bf16.mxu0 0
    %1442 = vmatpush1.bf16.msra.mxu0 0
    %1443 = vmatprep.subr.bf16.mxu0 0
    %1444 = vmatpush1.bf16.msra.mxu0 0
    %1445 = vmatprep.subr.bf16.mxu0 0
    %1446 = vmatpush1.bf16.msra.mxu0 %v1432
    %1447 = vmatprep.subr.bf16.mxu0 0
    %1448 = vmatpush1.bf16.msra.mxu0 %v1431
    %1449 = vmatprep.subr.bf16.mxu0 0
    %1450 = vmatpush2.bf16.msra.mxu0 0
    %1451 = vmatprep.subr.bf16.mxu0 0
    %1452 = vmatpush2.bf16.msra.mxu0 0
    %1453 = vmatprep.subr.bf16.mxu0 0
    %1454 = vmatpush2.bf16.msra.mxu0 0
    %1455 = vmatprep.subr.bf16.mxu0 0
    %1456 = vmatpush2.bf16.msra.mxu0 0
    %1457 = vmatprep.subr.bf16.mxu0 0
    %1458 = vmatpush2.bf16.msra.mxu0 0
    %1459 = vmatprep.subr.bf16.mxu0 0
    %1460 = vmatpush2.bf16.msra.mxu0 0
    %1461 = vmatprep.subr.bf16.mxu0 0
    %1462 = vmatpush2.bf16.msra.mxu0 0
    %1463 = vmatprep.subr.bf16.mxu0 0
    %1464 = vmatpush2.bf16.msra.mxu0 0
    %1465 = vmatprep.mubr.bf16.mxu0 0
    %1466 = vmatmul.mubr.bf16.gmra.mxu0 %v824
    %v1467 = vpop.f32.mrf.mxu0
    %v1468 = vadd.f32 %v811, %v1467
    %v1469 = vpop.f32.mrf.mxu0
    %v1470 = vpop.f32.mrf.mxu0
    %v1471 = vadd.f32 %v816, %v1470
    %v1472 = vpop.f32.mrf.mxu0
    %1473 = vdwg.mxu0
    %v1474 = vtanh.pop %v1468
    %v1475 = vsub.f32 %v1267, %v1471
    %v1476 = vsub.f32 0.0, %v1474
    %v1477 = vmul.f32 %v1476, 1.442695
    %v1478 = vpow.pop %v1477
    %v1479 = vmul.f32 %v1475, %v1478
    %v1480 = vpack.c.bf16 %v1479, %v1479
    %v1482 = vsel %vm598, %v1480, 0
    %1484 = vmatprep.subr.bf16.mxu0 0
    %1485 = vmatpush1.bf16.msra.mxu0 0
    %1486 = vmatprep.subr.bf16.mxu0 0
    %1487 = vmatpush1.bf16.msra.mxu0 0
    %1488 = vmatprep.subr.bf16.mxu0 0
    %1489 = vmatpush1.bf16.msra.mxu0 0
    %1490 = vmatprep.subr.bf16.mxu0 0
    %1491 = vmatpush1.bf16.msra.mxu0 0
    %1492 = vmatprep.subr.bf16.mxu0 0
    %1493 = vmatpush1.bf16.msra.mxu0 0
    %1494 = vmatprep.subr.bf16.mxu0 0
    %1495 = vmatpush1.bf16.msra.mxu0 0
    %1496 = vmatprep.subr.bf16.mxu0 0
    %1497 = vmatpush1.bf16.msra.mxu0 0
    %1498 = vmatprep.subr.bf16.mxu0 0
    %1499 = vmatpush1.bf16.msra.mxu0 %v1482
    %1500 = vmatprep.subr.bf16.mxu0 0
    %1501 = vmatpush2.bf16.msra.mxu0 0
    %1502 = vmatprep.subr.bf16.mxu0 0
    %1503 = vmatpush2.bf16.msra.mxu0 0
    %1504 = vmatprep.subr.bf16.mxu0 0
    %1505 = vmatpush2.bf16.msra.mxu0 0
    %1506 = vmatprep.subr.bf16.mxu0 0
    %1507 = vmatpush2.bf16.msra.mxu0 0
    %1508 = vmatprep.subr.bf16.mxu0 0
    %1509 = vmatpush2.bf16.msra.mxu0 0
    %1510 = vmatprep.subr.bf16.mxu0 0
    %1511 = vmatpush2.bf16.msra.mxu0 0
    %1512 = vmatprep.subr.bf16.mxu0 0
    %1513 = vmatpush2.bf16.msra.mxu0 0
    %1514 = vmatprep.subr.bf16.mxu0 0
    %1515 = vmatpush2.bf16.msra.mxu0 0
    %1516 = vmatprep.mubr.bf16.mxu0 0
    %1517 = vmatmul.mubr.bf16.gmra.mxu0 %v593
    %v1518 = vpop.f32.mrf.mxu0
    %v1519 = vadd.f32 %v558, %v1518
    %v1520 = vpop.f32.mrf.mxu0
    %v1521 = vpop.f32.mrf.mxu0
    %v1522 = vadd.f32 %v559, %v1521
    %v1523 = vpop.f32.mrf.mxu0
    %1524 = vmatprep.mubr.bf16.mxu0 0
    %1525 = vmatmul.mubr.bf16.gmra.mxu0 %v596
    %v1526 = vpop.f32.mrf.mxu0
    %v1527 = vadd.f32 %v560, %v1526
    %v1528 = vpop.f32.mrf.mxu0
    %v1529 = vpop.f32.mrf.mxu0
    %v1530 = vadd.f32 %v561, %v1529
    %v1531 = vpop.f32.mrf.mxu0
    %1532 = vdwg.mxu0
    %v1533 = vtanh.pop %v1519
    %v1534 = vtanh.pop %v1522
    %v1535 = vtanh.pop %v1527
    %v1536 = vtanh.pop %v1530
    %v1537 = vpack.c.bf16 %v1534, %v1533
    %v1538 = vpack.c.bf16 %v1536, %v1535
    %1539 = vmatprep.subr.bf16.mxu0 0
    %1540 = vmatpush1.bf16.msra.mxu0 0
    %1541 = vmatprep.subr.bf16.mxu0 0
    %1542 = vmatpush1.bf16.msra.mxu0 0
    %1543 = vmatprep.subr.bf16.mxu0 0
    %1544 = vmatpush1.bf16.msra.mxu0 0
    %1545 = vmatprep.subr.bf16.mxu0 0
    %1546 = vmatpush1.bf16.msra.mxu0 0
    %1547 = vmatprep.subr.bf16.mxu0 0
    %1548 = vmatpush1.bf16.msra.mxu0 0
    %1549 = vmatprep.subr.bf16.mxu0 0
    %1550 = vmatpush1.bf16.msra.mxu0 0
    %1551 = vmatprep.subr.bf16.mxu0 0
    %1552 = vmatpush1.bf16.msra.mxu0 %v1538
    %1553 = vmatprep.subr.bf16.mxu0 0
    %1554 = vmatpush1.bf16.msra.mxu0 %v1537
    %1555 = vmatprep.subr.bf16.mxu0 0
    %1556 = vmatpush2.bf16.msra.mxu0 0
    %1557 = vmatprep.subr.bf16.mxu0 0
    %1558 = vmatpush2.bf16.msra.mxu0 0
    %1559 = vmatprep.subr.bf16.mxu0 0
    %1560 = vmatpush2.bf16.msra.mxu0 0
    %1561 = vmatprep.subr.bf16.mxu0 0
    %1562 = vmatpush2.bf16.msra.mxu0 0
    %1563 = vmatprep.subr.bf16.mxu0 0
    %1564 = vmatpush2.bf16.msra.mxu0 0
    %1565 = vmatprep.subr.bf16.mxu0 0
    %1566 = vmatpush2.bf16.msra.mxu0 0
    %1567 = vmatprep.subr.bf16.mxu0 0
    %1568 = vmatpush2.bf16.msra.mxu0 0
    %1569 = vmatprep.subr.bf16.mxu0 0
    %1570 = vmatpush2.bf16.msra.mxu0 0
    %1571 = vmatprep.mubr.bf16.mxu0 0
    %1572 = vmatmul.mubr.bf16.gmra.mxu0 %v677
    %v1573 = vpop.f32.mrf.mxu0
    %v1574 = vadd.f32 %v664, %v1573
    %v1575 = vpop.f32.mrf.mxu0
    %v1576 = vpop.f32.mrf.mxu0
    %v1577 = vadd.f32 %v669, %v1576
    %v1578 = vpop.f32.mrf.mxu0
    %1579 = vdwg.mxu0
    %v1580 = vtanh.pop %v1574
    %v1581 = vsub.f32 %v1373, %v1577
    %v1582 = vsub.f32 0.0, %v1580
    %v1583 = vmul.f32 %v1582, 1.442695
    %v1584 = vpow.pop %v1583
    %v1585 = vmul.f32 %v1581, %v1584
    %1586 = vst [vmem:[#allocation2] sm:$0xff] %v1479
    %1587 = vst [vmem:[#allocation2 + $0x8] sm:$0xff] %v1585
    // Predicated region
    $region22: #{tpu_custom_call.1} parent=1 // pred_check
      _
    $region23: #{tpu_custom_call.1} parent=1 // pred_check_branch
      %1589 = sbr.rel (0) target = $region25
    $region24: #{tpu_custom_call.1} parent=1 // pred_region
      %s1591 = ssub.s32 256, 256
      %1592 = vsyncadd [#allocation3], %s1591
      %s1593 = sshll.u32 [#allocation2], 4
      %s1594 = int_to_ptr.vmem [resolvable:$true] %s1593
      %1599 = dma.vmem_to_hbm [thread:$0]  %s1594, 256, %s5, [#allocation3], 128, 128, 8
    $region25: #{tpu_custom_call.1} parent=1 // pred_fallthru
      _
    // Predicated region
    $region26: #{tpu_custom_call.1} parent=1 // pred_check
      _
    $region27: #{tpu_custom_call.1} parent=1 // pred_check_branch
      %1601 = sbr.rel (0) target = $region29
    $region28: #{tpu_custom_call.1} parent=1 // pred_region
      %1602 = dma.done [#allocation3], 256
    $region29: #{tpu_custom_call.1} parent=1 // pred_fallthru
      _
    %1603 = vsyncpa [#allocation3], 1

</llo_original>
